<compile_context>
chip_gen: v5e
topology: v5e:2x2
jax: 0.10.0
libtpu: 0.0.40
codegen_flags: <defaults>
</compile_context>

<pallas_src>
import functools

import jax
import jax.numpy as jnp
from jax import lax
from jax.experimental import pallas as pl
from jax.experimental.pallas import tpu as pltpu

SELU_ALPHA = 1.6732632423543772
SELU_SCALE = 1.0507009873554805

VMEM_SPEC = pl.BlockSpec(memory_space=pltpu.MemorySpace.VMEM)


# ----------------------------------------------------------------------------
# Single fused kernel: LabelNet GCN -> (per token channel) dilated convs + SELU
# -> attention fused with the label-weighted reduction -> CorNet blocks.
# ----------------------------------------------------------------------------
def _fused_forward_kernel(*refs, ksz, dils, batch, n_conv, n_cornet):
    (adj_ref, gf_ref, gw1_ref, gb1_ref, gw2_ref, gb2_ref, x_ref) = refs[:7]
    conv_p = [(refs[7 + 2 * i][...], refs[8 + 2 * i][...]) for i in range(n_conv)]
    off = 7 + 2 * n_conv
    cor_p = [tuple(refs[off + 4 * i + j][...] for j in range(4))
             for i in range(n_cornet)]
    o_ref = refs[off + 4 * n_cornet]

    # ---- LabelNet: two GCN layers (dense adjacency == copy_src + sum) + residual
    adj = adj_ref[...]
    gf = gf_ref[...]
    h1 = jnp.dot(adj, gf, preferred_element_type=jnp.float32)
    y1 = lax.dot_general(h1, gw1_ref[...], (((1,), (1,)), ((), ())),
                         preferred_element_type=jnp.float32) + gb1_ref[...]
    y1 = jnp.maximum(y1, 0.0)
    h2 = jnp.dot(adj, y1, preferred_element_type=jnp.float32)
    lbl = lax.dot_general(h2, gw2_ref[...], (((1,), (1,)), ((), ())),
                          preferred_element_type=jnp.float32) + gb2_ref[...] + gf

    # ---- one token channel: im2col dilated convs + SELU, then attention fused
    #      with the label-weighted reduction:
    #          contrib[n] = sum_l softmax_l(scores)[l, n] * scores[l, n]
    def branch_contrib(idx):
        xb = x_ref[idx]                                    # (E, L), channels-first
        for (w_col, bias), d in zip(conv_p, dils):
            l_out = xb.shape[1] - d * (ksz - 1)
            # im2col: stack the K dilated taps along the 8-aligned sublane axis.
            cols = jnp.concatenate(
                [xb[:, k * d:k * d + l_out] for k in range(ksz)], axis=0)
            y = jnp.dot(w_col, cols, preferred_element_type=jnp.float32) + bias
            xb = SELU_SCALE * jnp.where(y > 0, y,
                                        SELU_ALPHA * (jnp.exp(y) - 1.0))
        scores = lax.dot_general(xb, lbl, (((0,), (1,)), ((), ())),
                                 preferred_element_type=jnp.float32)   # (Lc, N)
        m = jnp.max(scores, axis=0, keepdims=True)
        p = jnp.exp(scores - m)
        denom = jnp.sum(p, axis=0, keepdims=True)
        num = jnp.sum(p * scores, axis=0, keepdims=True)
        return num / denom                                  # (1, N)

    # ---- combine abstract + method contributions, then chain CorNet, per row
    for i in range(batch):
        xf = branch_contrib(i) + branch_contrib(i + batch)   # (1, N)
        for (w1, b1, w2, b2) in cor_p:
            z = 1.0 / (1.0 + jnp.exp(-xf))                    # sigmoid
            c = lax.dot_general(z, w1, (((1,), (1,)), ((), ())),
                                preferred_element_type=jnp.float32) + b1
            c = jnp.where(c > 0, c, jnp.exp(c) - 1.0)         # ELU (alpha=1)
            xf = lax.dot_general(c, w2, (((1,), (1,)), ((), ())),
                                 preferred_element_type=jnp.float32) + b2 + xf
        o_ref[pl.ds(i, 1), :] = xf


# ----------------------------------------------------------------------------
# Wrapper: embedding gather in plain JAX, then one pallas_call for everything.
# ----------------------------------------------------------------------------
def pallas_forward(abstract_tok, method_tok, adj, g_feat, params):
    bsz, _ = abstract_tok.shape
    n_labels = adj.shape[0]

    # Embedding gather (tiny data-dependent gather: plain-JAX glue). Both token
    # channels concatenated along batch so the kernel handles them in one pass.
    tok_all = jnp.concatenate([abstract_tok, method_tok], axis=0)       # (2B, L)
    x_all = jnp.transpose(params["embedding"][tok_all], (0, 2, 1))      # (2B, E, L)

    conv_flat = []
    for (w, b) in params["convs"]:
        e_out, e_in, k = w.shape
        # im2col weight: W_col[o, k*E_in + i] = W[o, i, k]
        conv_flat.append(jnp.transpose(w, (0, 2, 1)).reshape(e_out, k * e_in))
        conv_flat.append(b.reshape(e_out, 1))
    cor_flat = []
    for (w1, b1, w2, b2) in params["cornet"]:
        cor_flat += [w1, b1.reshape(1, -1), w2, b2.reshape(1, -1)]

    inputs = [adj, g_feat,
              params["gcn_w1"], params["gcn_b1"].reshape(1, -1),
              params["gcn_w2"], params["gcn_b2"].reshape(1, -1),
              x_all] + conv_flat + cor_flat

    kernel = functools.partial(
        _fused_forward_kernel,
        ksz=params["convs"][0][0].shape[2],
        dils=tuple(range(1, len(params["convs"]) + 1)),
        batch=bsz,
        n_conv=len(params["convs"]),
        n_cornet=len(params["cornet"]))

    return pl.pallas_call(
        kernel,
        in_specs=[VMEM_SPEC] * len(inputs),
        out_specs=VMEM_SPEC,
        out_shape=jax.ShapeDtypeStruct((bsz, n_labels), jnp.float32),
    )(*inputs)


# ----------------------------------------------------------------------------
# Pure-JAX reference (mirrors the PyTorch forward) for a correctness check.
# ----------------------------------------------------------------------------
def reference_forward(abstract_tok, method_tok, adj, g_feat, params):
    h1 = adj @ g_feat
    y1 = jnp.maximum(h1 @ params["gcn_w1"].T + params["gcn_b1"], 0.0)
    h2 = adj @ y1
    label = h2 @ params["gcn_w2"].T + params["gcn_b2"] + g_feat

    def dconv(x):
        for (w, b), d in zip(params["convs"], (1, 2, 3)):
            bsz, _, l_in = x.shape
            e_out, _, k = w.shape
            l_out = l_in - d * (k - 1)
            acc = jnp.zeros((bsz, e_out, l_out), jnp.float32)
            for kk in range(k):
                acc = acc + jnp.einsum("oi,bil->bol", w[:, :, kk],
                                       x[:, :, kk * d:kk * d + l_out])
            acc = acc + b[None, :, None]
            x = SELU_SCALE * jnp.where(acc > 0, acc,
                                       SELU_ALPHA * (jnp.exp(acc) - 1.0))
        return x

    def branch(tok):
        x = params["embedding"][tok]
        conv = dconv(jnp.transpose(x, (0, 2, 1)))
        scores = jnp.einsum("bel,ne->bln", conv, label)
        atten = jax.nn.softmax(scores, axis=1)
        return jnp.einsum("bel,bln->bne", conv, atten)

    xf = jnp.sum((branch(abstract_tok) + branch(method_tok)) * label[None], axis=2)
    for (w1, b1, w2, b2) in params["cornet"]:
        z = jax.nn.sigmoid(xf)
        c = z @ w1.T + b1
        c = jnp.where(c > 0, c, jnp.exp(c) - 1.0)
        xf = c @ w2.T + b2 + xf
    return xf


def xavier_uniform(key, shape, fan_in, fan_out):
    bound = (6.0 / (fan_in + fan_out)) ** 0.5
    return jax.random.uniform(key, shape, jnp.float32, -bound, bound)


if __name__ == "__main__":
    # Small shapes consistent with the module's forward.
    VOCAB, EMB, KSZ = 50, 32, 3
    N_LABELS = 16            # output_size == number of graph (label) nodes
    CORNET_DIM = 32
    B, L = 2, 32

    key = jax.random.PRNGKey(0)
    ks = jax.random.split(key, 24)

    params = {
        "embedding": jax.random.normal(ks[0], (VOCAB, EMB), jnp.float32) * 0.1,
        "convs": [
            (xavier_uniform(ks[1 + 2 * i], (EMB, EMB, KSZ), EMB * KSZ, EMB),
             jax.random.uniform(ks[2 + 2 * i], (EMB,), jnp.float32, -0.05, 0.05))
            for i in range(3)
        ],
        "gcn_w1": xavier_uniform(ks[7], (EMB, EMB), EMB, EMB),
        "gcn_b1": jax.random.uniform(ks[8], (EMB,), jnp.float32, -0.05, 0.05),
        "gcn_w2": xavier_uniform(ks[9], (EMB, EMB), EMB, EMB),
        "gcn_b2": jax.random.uniform(ks[10], (EMB,), jnp.float32, -0.05, 0.05),
        "cornet": [
            (xavier_uniform(ks[11 + 4 * i], (CORNET_DIM, N_LABELS), N_LABELS, CORNET_DIM),
             jnp.zeros((CORNET_DIM,), jnp.float32),
             xavier_uniform(ks[12 + 4 * i], (N_LABELS, CORNET_DIM), CORNET_DIM, N_LABELS),
             jnp.zeros((N_LABELS,), jnp.float32))
            for i in range(2)
        ],
    }

    abstract_tok = jax.random.randint(ks[20], (B, L), 0, VOCAB)
    method_tok = jax.random.randint(ks[21], (B, L), 0, VOCAB)
    adj = (jax.random.uniform(ks[22], (N_LABELS, N_LABELS)) < 0.3).astype(jnp.float32)
    g_feat = jax.random.normal(ks[23], (N_LABELS, EMB), jnp.float32)

    out = jax.jit(pallas_forward)(abstract_tok, method_tok, adj, g_feat, params)
    out = jax.block_until_ready(out)

    ref = reference_forward(abstract_tok, method_tok, adj, g_feat, params)
    assert out.shape == (B, N_LABELS)
    assert jnp.allclose(out, ref, atol=2e-3, rtol=2e-3), \
        f"max abs diff {jnp.max(jnp.abs(out - ref))}"

    print("KERNEL_OK")
</pallas_src>

<mosaic_0001>
module attributes {stable_mosaic.version = 11 : i64} {
  func.func @_fused_forward_kernel(%arg0: memref<16x16xf32, #tpu.memory_space<vmem>>, %arg1: memref<16x32xf32, #tpu.memory_space<vmem>>, %arg2: memref<32x32xf32, #tpu.memory_space<vmem>>, %arg3: memref<1x32xf32, #tpu.memory_space<vmem>>, %arg4: memref<32x32xf32, #tpu.memory_space<vmem>>, %arg5: memref<1x32xf32, #tpu.memory_space<vmem>>, %arg6: memref<4x32x32xf32, #tpu.memory_space<vmem>>, %arg7: memref<32x96xf32, #tpu.memory_space<vmem>>, %arg8: memref<32x1xf32, #tpu.memory_space<vmem>>, %arg9: memref<32x96xf32, #tpu.memory_space<vmem>>, %arg10: memref<32x1xf32, #tpu.memory_space<vmem>>, %arg11: memref<32x96xf32, #tpu.memory_space<vmem>>, %arg12: memref<32x1xf32, #tpu.memory_space<vmem>>, %arg13: memref<32x16xf32, #tpu.memory_space<vmem>>, %arg14: memref<1x32xf32, #tpu.memory_space<vmem>>, %arg15: memref<16x32xf32, #tpu.memory_space<vmem>>, %arg16: memref<1x16xf32, #tpu.memory_space<vmem>>, %arg17: memref<32x16xf32, #tpu.memory_space<vmem>>, %arg18: memref<1x32xf32, #tpu.memory_space<vmem>>, %arg19: memref<16x32xf32, #tpu.memory_space<vmem>>, %arg20: memref<1x16xf32, #tpu.memory_space<vmem>>, %arg21: memref<2x16xf32, #tpu.memory_space<vmem>>) attributes {dimension_semantics = [], scalar_prefetch = 0 : i64, scratch_operands = 0 : i64, tpu.core_type = #tpu.core_type<tc>} {
    %c0 = arith.constant 0 : index
    %c0_0 = arith.constant 0 : index
    %0 = vector.load %arg7[%c0, %c0_0] : memref<32x96xf32, #tpu.memory_space<vmem>>, vector<32x96xf32>
    %c0_1 = arith.constant 0 : index
    %c0_2 = arith.constant 0 : index
    %1 = vector.load %arg8[%c0_1, %c0_2] : memref<32x1xf32, #tpu.memory_space<vmem>>, vector<32x1xf32>
    %c0_3 = arith.constant 0 : index
    %c0_4 = arith.constant 0 : index
    %2 = vector.load %arg9[%c0_3, %c0_4] : memref<32x96xf32, #tpu.memory_space<vmem>>, vector<32x96xf32>
    %c0_5 = arith.constant 0 : index
    %c0_6 = arith.constant 0 : index
    %3 = vector.load %arg10[%c0_5, %c0_6] : memref<32x1xf32, #tpu.memory_space<vmem>>, vector<32x1xf32>
    %c0_7 = arith.constant 0 : index
    %c0_8 = arith.constant 0 : index
    %4 = vector.load %arg11[%c0_7, %c0_8] : memref<32x96xf32, #tpu.memory_space<vmem>>, vector<32x96xf32>
    %c0_9 = arith.constant 0 : index
    %c0_10 = arith.constant 0 : index
    %5 = vector.load %arg12[%c0_9, %c0_10] : memref<32x1xf32, #tpu.memory_space<vmem>>, vector<32x1xf32>
    %c0_11 = arith.constant 0 : index
    %c0_12 = arith.constant 0 : index
    %6 = vector.load %arg13[%c0_11, %c0_12] : memref<32x16xf32, #tpu.memory_space<vmem>>, vector<32x16xf32>
    %c0_13 = arith.constant 0 : index
    %c0_14 = arith.constant 0 : index
    %7 = vector.load %arg14[%c0_13, %c0_14] : memref<1x32xf32, #tpu.memory_space<vmem>>, vector<1x32xf32>
    %c0_15 = arith.constant 0 : index
    %c0_16 = arith.constant 0 : index
    %8 = vector.load %arg15[%c0_15, %c0_16] : memref<16x32xf32, #tpu.memory_space<vmem>>, vector<16x32xf32>
    %c0_17 = arith.constant 0 : index
    %c0_18 = arith.constant 0 : index
    %9 = vector.load %arg16[%c0_17, %c0_18] : memref<1x16xf32, #tpu.memory_space<vmem>>, vector<1x16xf32>
    %c0_19 = arith.constant 0 : index
    %c0_20 = arith.constant 0 : index
    %10 = vector.load %arg17[%c0_19, %c0_20] : memref<32x16xf32, #tpu.memory_space<vmem>>, vector<32x16xf32>
    %c0_21 = arith.constant 0 : index
    %c0_22 = arith.constant 0 : index
    %11 = vector.load %arg18[%c0_21, %c0_22] : memref<1x32xf32, #tpu.memory_space<vmem>>, vector<1x32xf32>
    %c0_23 = arith.constant 0 : index
    %c0_24 = arith.constant 0 : index
    %12 = vector.load %arg19[%c0_23, %c0_24] : memref<16x32xf32, #tpu.memory_space<vmem>>, vector<16x32xf32>
    %c0_25 = arith.constant 0 : index
    %c0_26 = arith.constant 0 : index
    %13 = vector.load %arg20[%c0_25, %c0_26] : memref<1x16xf32, #tpu.memory_space<vmem>>, vector<1x16xf32>
    %c0_27 = arith.constant 0 : index
    %c0_28 = arith.constant 0 : index
    %14 = vector.load %arg0[%c0_27, %c0_28] : memref<16x16xf32, #tpu.memory_space<vmem>>, vector<16x16xf32>
    %c0_29 = arith.constant 0 : index
    %c0_30 = arith.constant 0 : index
    %15 = vector.load %arg1[%c0_29, %c0_30] : memref<16x32xf32, #tpu.memory_space<vmem>>, vector<16x32xf32>
    %cst = arith.constant dense<0.000000e+00> : vector<16x32xf32>
    %16 = tpu.matmul %14, %15, %cst {dimension_numbers = #tpu.dot_dimension_numbers<[1], [0], [0], [1], [0, 0, 1, 1], [], []>} : vector<16x16xf32>, vector<16x32xf32>, vector<16x32xf32> -> vector<16x32xf32>
    %c0_31 = arith.constant 0 : index
    %c0_32 = arith.constant 0 : index
    %17 = vector.load %arg2[%c0_31, %c0_32] : memref<32x32xf32, #tpu.memory_space<vmem>>, vector<32x32xf32>
    %cst_33 = arith.constant dense<0.000000e+00> : vector<16x32xf32>
    %18 = tpu.matmul %16, %17, %cst_33 {dimension_numbers = #tpu.dot_dimension_numbers<[1], [1], [0], [0], [0, 0, 1, 0], [], []>} : vector<16x32xf32>, vector<32x32xf32>, vector<16x32xf32> -> vector<16x32xf32>
    %c0_34 = arith.constant 0 : index
    %c0_35 = arith.constant 0 : index
    %19 = vector.load %arg3[%c0_34, %c0_35] : memref<1x32xf32, #tpu.memory_space<vmem>>, vector<1x32xf32>
    %20 = vector.broadcast %19 : vector<1x32xf32> to vector<16x32xf32>
    %21 = arith.addf %18, %20 : vector<16x32xf32>
    %cst_36 = arith.constant 0.000000e+00 : f32
    %22 = vector.broadcast %cst_36 : f32 to vector<16x32xf32>
    %23 = arith.maximumf %21, %22 : vector<16x32xf32>
    %cst_37 = arith.constant dense<0.000000e+00> : vector<16x32xf32>
    %24 = tpu.matmul %14, %23, %cst_37 {dimension_numbers = #tpu.dot_dimension_numbers<[1], [0], [0], [1], [0, 0, 1, 1], [], []>} : vector<16x16xf32>, vector<16x32xf32>, vector<16x32xf32> -> vector<16x32xf32>
    %c0_38 = arith.constant 0 : index
    %c0_39 = arith.constant 0 : index
    %25 = vector.load %arg4[%c0_38, %c0_39] : memref<32x32xf32, #tpu.memory_space<vmem>>, vector<32x32xf32>
    %cst_40 = arith.constant dense<0.000000e+00> : vector<16x32xf32>
    %26 = tpu.matmul %24, %25, %cst_40 {dimension_numbers = #tpu.dot_dimension_numbers<[1], [1], [0], [0], [0, 0, 1, 0], [], []>} : vector<16x32xf32>, vector<32x32xf32>, vector<16x32xf32> -> vector<16x32xf32>
    %c0_41 = arith.constant 0 : index
    %c0_42 = arith.constant 0 : index
    %27 = vector.load %arg5[%c0_41, %c0_42] : memref<1x32xf32, #tpu.memory_space<vmem>>, vector<1x32xf32>
    %28 = vector.broadcast %27 : vector<1x32xf32> to vector<16x32xf32>
    %29 = arith.addf %26, %28 : vector<16x32xf32>
    %30 = arith.addf %29, %15 : vector<16x32xf32>
    %c0_43 = arith.constant 0 : index
    %c0_44 = arith.constant 0 : index
    %c0_45 = arith.constant 0 : index
    %31 = vector.load %arg6[%c0_43, %c0_44, %c0_45] : memref<4x32x32xf32, #tpu.memory_space<vmem>>, vector<1x32x32xf32>
    %32 = vector.shape_cast %31 : vector<1x32x32xf32> to vector<32x32xf32>
    %33 = vector.extract_strided_slice %32 {offsets = [0, 0], sizes = [32, 30], strides = [1, 1]} : vector<32x32xf32> to vector<32x30xf32>
    %34 = vector.extract_strided_slice %32 {offsets = [0, 1], sizes = [32, 30], strides = [1, 1]} : vector<32x32xf32> to vector<32x30xf32>
    %35 = vector.extract_strided_slice %32 {offsets = [0, 2], sizes = [32, 30], strides = [1, 1]} : vector<32x32xf32> to vector<32x30xf32>
    %36 = tpu.concatenate %33, %34, %35 in 0 : vector<32x30xf32>, vector<32x30xf32>, vector<32x30xf32> -> vector<96x30xf32>
    %cst_46 = arith.constant dense<0.000000e+00> : vector<32x30xf32>
    %37 = tpu.matmul %0, %36, %cst_46 {dimension_numbers = #tpu.dot_dimension_numbers<[1], [0], [0], [1], [0, 0, 1, 1], [], []>} : vector<32x96xf32>, vector<96x30xf32>, vector<32x30xf32> -> vector<32x30xf32>
    %38 = vector.broadcast %1 : vector<32x1xf32> to vector<32x30xf32>
    %39 = arith.addf %37, %38 : vector<32x30xf32>
    %cst_47 = arith.constant 0.000000e+00 : f32
    %40 = vector.broadcast %cst_47 : f32 to vector<32x30xf32>
    %41 = arith.cmpf ogt, %39, %40 : vector<32x30xf32>
    %42 = math.exp %39 : vector<32x30xf32>
    %cst_48 = arith.constant 1.000000e+00 : f32
    %43 = vector.broadcast %cst_48 : f32 to vector<32x30xf32>
    %44 = arith.subf %42, %43 : vector<32x30xf32>
    %cst_49 = arith.constant 1.67326319 : f32
    %45 = vector.broadcast %cst_49 : f32 to vector<32x30xf32>
    %46 = arith.mulf %45, %44 : vector<32x30xf32>
    %47 = arith.select %41, %39, %46 : vector<32x30xi1>, vector<32x30xf32>
    %cst_50 = arith.constant 1.05070102 : f32
    %48 = vector.broadcast %cst_50 : f32 to vector<32x30xf32>
    %49 = arith.mulf %48, %47 : vector<32x30xf32>
    %50 = vector.extract_strided_slice %49 {offsets = [0, 0], sizes = [32, 26], strides = [1, 1]} : vector<32x30xf32> to vector<32x26xf32>
    %51 = vector.extract_strided_slice %49 {offsets = [0, 2], sizes = [32, 26], strides = [1, 1]} : vector<32x30xf32> to vector<32x26xf32>
    %52 = vector.extract_strided_slice %49 {offsets = [0, 4], sizes = [32, 26], strides = [1, 1]} : vector<32x30xf32> to vector<32x26xf32>
    %53 = tpu.concatenate %50, %51, %52 in 0 : vector<32x26xf32>, vector<32x26xf32>, vector<32x26xf32> -> vector<96x26xf32>
    %cst_51 = arith.constant dense<0.000000e+00> : vector<32x26xf32>
    %54 = tpu.matmul %2, %53, %cst_51 {dimension_numbers = #tpu.dot_dimension_numbers<[1], [0], [0], [1], [0, 0, 1, 1], [], []>} : vector<32x96xf32>, vector<96x26xf32>, vector<32x26xf32> -> vector<32x26xf32>
    %55 = vector.broadcast %3 : vector<32x1xf32> to vector<32x26xf32>
    %56 = arith.addf %54, %55 : vector<32x26xf32>
    %cst_52 = arith.constant 0.000000e+00 : f32
    %57 = vector.broadcast %cst_52 : f32 to vector<32x26xf32>
    %58 = arith.cmpf ogt, %56, %57 : vector<32x26xf32>
    %59 = math.exp %56 : vector<32x26xf32>
    %cst_53 = arith.constant 1.000000e+00 : f32
    %60 = vector.broadcast %cst_53 : f32 to vector<32x26xf32>
    %61 = arith.subf %59, %60 : vector<32x26xf32>
    %cst_54 = arith.constant 1.67326319 : f32
    %62 = vector.broadcast %cst_54 : f32 to vector<32x26xf32>
    %63 = arith.mulf %62, %61 : vector<32x26xf32>
    %64 = arith.select %58, %56, %63 : vector<32x26xi1>, vector<32x26xf32>
    %cst_55 = arith.constant 1.05070102 : f32
    %65 = vector.broadcast %cst_55 : f32 to vector<32x26xf32>
    %66 = arith.mulf %65, %64 : vector<32x26xf32>
    %67 = vector.extract_strided_slice %66 {offsets = [0, 0], sizes = [32, 20], strides = [1, 1]} : vector<32x26xf32> to vector<32x20xf32>
    %68 = vector.extract_strided_slice %66 {offsets = [0, 3], sizes = [32, 20], strides = [1, 1]} : vector<32x26xf32> to vector<32x20xf32>
    %69 = vector.extract_strided_slice %66 {offsets = [0, 6], sizes = [32, 20], strides = [1, 1]} : vector<32x26xf32> to vector<32x20xf32>
    %70 = tpu.concatenate %67, %68, %69 in 0 : vector<32x20xf32>, vector<32x20xf32>, vector<32x20xf32> -> vector<96x20xf32>
    %cst_56 = arith.constant dense<0.000000e+00> : vector<32x20xf32>
    %71 = tpu.matmul %4, %70, %cst_56 {dimension_numbers = #tpu.dot_dimension_numbers<[1], [0], [0], [1], [0, 0, 1, 1], [], []>} : vector<32x96xf32>, vector<96x20xf32>, vector<32x20xf32> -> vector<32x20xf32>
    %72 = vector.broadcast %5 : vector<32x1xf32> to vector<32x20xf32>
    %73 = arith.addf %71, %72 : vector<32x20xf32>
    %cst_57 = arith.constant 0.000000e+00 : f32
    %74 = vector.broadcast %cst_57 : f32 to vector<32x20xf32>
    %75 = arith.cmpf ogt, %73, %74 : vector<32x20xf32>
    %76 = math.exp %73 : vector<32x20xf32>
    %cst_58 = arith.constant 1.000000e+00 : f32
    %77 = vector.broadcast %cst_58 : f32 to vector<32x20xf32>
    %78 = arith.subf %76, %77 : vector<32x20xf32>
    %cst_59 = arith.constant 1.67326319 : f32
    %79 = vector.broadcast %cst_59 : f32 to vector<32x20xf32>
    %80 = arith.mulf %79, %78 : vector<32x20xf32>
    %81 = arith.select %75, %73, %80 : vector<32x20xi1>, vector<32x20xf32>
    %cst_60 = arith.constant 1.05070102 : f32
    %82 = vector.broadcast %cst_60 : f32 to vector<32x20xf32>
    %83 = arith.mulf %82, %81 : vector<32x20xf32>
    %cst_61 = arith.constant dense<0.000000e+00> : vector<20x16xf32>
    %84 = tpu.matmul %83, %30, %cst_61 {dimension_numbers = #tpu.dot_dimension_numbers<[0], [1], [1], [0], [0, 1, 1, 0], [], []>} : vector<32x20xf32>, vector<16x32xf32>, vector<20x16xf32> -> vector<20x16xf32>
    %cst_62 = arith.constant dense<0xFF800000> : vector<16xf32>
    %85 = vector.multi_reduction <maximumf>, %84, %cst_62 [0] : vector<20x16xf32> to vector<16xf32>
    %86 = vector.shape_cast %85 : vector<16xf32> to vector<1x16xf32>
    %87 = vector.broadcast %86 : vector<1x16xf32> to vector<20x16xf32>
    %88 = arith.subf %84, %87 : vector<20x16xf32>
    %89 = math.exp %88 : vector<20x16xf32>
    %cst_63 = arith.constant dense<0.000000e+00> : vector<16xf32>
    %90 = vector.multi_reduction <add>, %89, %cst_63 [0] : vector<20x16xf32> to vector<16xf32>
    %91 = vector.shape_cast %90 : vector<16xf32> to vector<1x16xf32>
    %92 = arith.mulf %89, %84 : vector<20x16xf32>
    %cst_64 = arith.constant dense<0.000000e+00> : vector<16xf32>
    %93 = vector.multi_reduction <add>, %92, %cst_64 [0] : vector<20x16xf32> to vector<16xf32>
    %94 = vector.shape_cast %93 : vector<16xf32> to vector<1x16xf32>
    %95 = arith.divf %94, %91 : vector<1x16xf32>
    %c2 = arith.constant 2 : index
    %c0_65 = arith.constant 0 : index
    %c0_66 = arith.constant 0 : index
    %96 = vector.load %arg6[%c2, %c0_65, %c0_66] : memref<4x32x32xf32, #tpu.memory_space<vmem>>, vector<1x32x32xf32>
    %97 = vector.shape_cast %96 : vector<1x32x32xf32> to vector<32x32xf32>
    %98 = vector.extract_strided_slice %97 {offsets = [0, 0], sizes = [32, 30], strides = [1, 1]} : vector<32x32xf32> to vector<32x30xf32>
    %99 = vector.extract_strided_slice %97 {offsets = [0, 1], sizes = [32, 30], strides = [1, 1]} : vector<32x32xf32> to vector<32x30xf32>
    %100 = vector.extract_strided_slice %97 {offsets = [0, 2], sizes = [32, 30], strides = [1, 1]} : vector<32x32xf32> to vector<32x30xf32>
    %101 = tpu.concatenate %98, %99, %100 in 0 : vector<32x30xf32>, vector<32x30xf32>, vector<32x30xf32> -> vector<96x30xf32>
    %cst_67 = arith.constant dense<0.000000e+00> : vector<32x30xf32>
    %102 = tpu.matmul %0, %101, %cst_67 {dimension_numbers = #tpu.dot_dimension_numbers<[1], [0], [0], [1], [0, 0, 1, 1], [], []>} : vector<32x96xf32>, vector<96x30xf32>, vector<32x30xf32> -> vector<32x30xf32>
    %103 = vector.broadcast %1 : vector<32x1xf32> to vector<32x30xf32>
    %104 = arith.addf %102, %103 : vector<32x30xf32>
    %cst_68 = arith.constant 0.000000e+00 : f32
    %105 = vector.broadcast %cst_68 : f32 to vector<32x30xf32>
    %106 = arith.cmpf ogt, %104, %105 : vector<32x30xf32>
    %107 = math.exp %104 : vector<32x30xf32>
    %cst_69 = arith.constant 1.000000e+00 : f32
    %108 = vector.broadcast %cst_69 : f32 to vector<32x30xf32>
    %109 = arith.subf %107, %108 : vector<32x30xf32>
    %cst_70 = arith.constant 1.67326319 : f32
    %110 = vector.broadcast %cst_70 : f32 to vector<32x30xf32>
    %111 = arith.mulf %110, %109 : vector<32x30xf32>
    %112 = arith.select %106, %104, %111 : vector<32x30xi1>, vector<32x30xf32>
    %cst_71 = arith.constant 1.05070102 : f32
    %113 = vector.broadcast %cst_71 : f32 to vector<32x30xf32>
    %114 = arith.mulf %113, %112 : vector<32x30xf32>
    %115 = vector.extract_strided_slice %114 {offsets = [0, 0], sizes = [32, 26], strides = [1, 1]} : vector<32x30xf32> to vector<32x26xf32>
    %116 = vector.extract_strided_slice %114 {offsets = [0, 2], sizes = [32, 26], strides = [1, 1]} : vector<32x30xf32> to vector<32x26xf32>
    %117 = vector.extract_strided_slice %114 {offsets = [0, 4], sizes = [32, 26], strides = [1, 1]} : vector<32x30xf32> to vector<32x26xf32>
    %118 = tpu.concatenate %115, %116, %117 in 0 : vector<32x26xf32>, vector<32x26xf32>, vector<32x26xf32> -> vector<96x26xf32>
    %cst_72 = arith.constant dense<0.000000e+00> : vector<32x26xf32>
    %119 = tpu.matmul %2, %118, %cst_72 {dimension_numbers = #tpu.dot_dimension_numbers<[1], [0], [0], [1], [0, 0, 1, 1], [], []>} : vector<32x96xf32>, vector<96x26xf32>, vector<32x26xf32> -> vector<32x26xf32>
    %120 = vector.broadcast %3 : vector<32x1xf32> to vector<32x26xf32>
    %121 = arith.addf %119, %120 : vector<32x26xf32>
    %cst_73 = arith.constant 0.000000e+00 : f32
    %122 = vector.broadcast %cst_73 : f32 to vector<32x26xf32>
    %123 = arith.cmpf ogt, %121, %122 : vector<32x26xf32>
    %124 = math.exp %121 : vector<32x26xf32>
    %cst_74 = arith.constant 1.000000e+00 : f32
    %125 = vector.broadcast %cst_74 : f32 to vector<32x26xf32>
    %126 = arith.subf %124, %125 : vector<32x26xf32>
    %cst_75 = arith.constant 1.67326319 : f32
    %127 = vector.broadcast %cst_75 : f32 to vector<32x26xf32>
    %128 = arith.mulf %127, %126 : vector<32x26xf32>
    %129 = arith.select %123, %121, %128 : vector<32x26xi1>, vector<32x26xf32>
    %cst_76 = arith.constant 1.05070102 : f32
    %130 = vector.broadcast %cst_76 : f32 to vector<32x26xf32>
    %131 = arith.mulf %130, %129 : vector<32x26xf32>
    %132 = vector.extract_strided_slice %131 {offsets = [0, 0], sizes = [32, 20], strides = [1, 1]} : vector<32x26xf32> to vector<32x20xf32>
    %133 = vector.extract_strided_slice %131 {offsets = [0, 3], sizes = [32, 20], strides = [1, 1]} : vector<32x26xf32> to vector<32x20xf32>
    %134 = vector.extract_strided_slice %131 {offsets = [0, 6], sizes = [32, 20], strides = [1, 1]} : vector<32x26xf32> to vector<32x20xf32>
    %135 = tpu.concatenate %132, %133, %134 in 0 : vector<32x20xf32>, vector<32x20xf32>, vector<32x20xf32> -> vector<96x20xf32>
    %cst_77 = arith.constant dense<0.000000e+00> : vector<32x20xf32>
    %136 = tpu.matmul %4, %135, %cst_77 {dimension_numbers = #tpu.dot_dimension_numbers<[1], [0], [0], [1], [0, 0, 1, 1], [], []>} : vector<32x96xf32>, vector<96x20xf32>, vector<32x20xf32> -> vector<32x20xf32>
    %137 = vector.broadcast %5 : vector<32x1xf32> to vector<32x20xf32>
    %138 = arith.addf %136, %137 : vector<32x20xf32>
    %cst_78 = arith.constant 0.000000e+00 : f32
    %139 = vector.broadcast %cst_78 : f32 to vector<32x20xf32>
    %140 = arith.cmpf ogt, %138, %139 : vector<32x20xf32>
    %141 = math.exp %138 : vector<32x20xf32>
    %cst_79 = arith.constant 1.000000e+00 : f32
    %142 = vector.broadcast %cst_79 : f32 to vector<32x20xf32>
    %143 = arith.subf %141, %142 : vector<32x20xf32>
    %cst_80 = arith.constant 1.67326319 : f32
    %144 = vector.broadcast %cst_80 : f32 to vector<32x20xf32>
    %145 = arith.mulf %144, %143 : vector<32x20xf32>
    %146 = arith.select %140, %138, %145 : vector<32x20xi1>, vector<32x20xf32>
    %cst_81 = arith.constant 1.05070102 : f32
    %147 = vector.broadcast %cst_81 : f32 to vector<32x20xf32>
    %148 = arith.mulf %147, %146 : vector<32x20xf32>
    %cst_82 = arith.constant dense<0.000000e+00> : vector<20x16xf32>
    %149 = tpu.matmul %148, %30, %cst_82 {dimension_numbers = #tpu.dot_dimension_numbers<[0], [1], [1], [0], [0, 1, 1, 0], [], []>} : vector<32x20xf32>, vector<16x32xf32>, vector<20x16xf32> -> vector<20x16xf32>
    %cst_83 = arith.constant dense<0xFF800000> : vector<16xf32>
    %150 = vector.multi_reduction <maximumf>, %149, %cst_83 [0] : vector<20x16xf32> to vector<16xf32>
    %151 = vector.shape_cast %150 : vector<16xf32> to vector<1x16xf32>
    %152 = vector.broadcast %151 : vector<1x16xf32> to vector<20x16xf32>
    %153 = arith.subf %149, %152 : vector<20x16xf32>
    %154 = math.exp %153 : vector<20x16xf32>
    %cst_84 = arith.constant dense<0.000000e+00> : vector<16xf32>
    %155 = vector.multi_reduction <add>, %154, %cst_84 [0] : vector<20x16xf32> to vector<16xf32>
    %156 = vector.shape_cast %155 : vector<16xf32> to vector<1x16xf32>
    %157 = arith.mulf %154, %149 : vector<20x16xf32>
    %cst_85 = arith.constant dense<0.000000e+00> : vector<16xf32>
    %158 = vector.multi_reduction <add>, %157, %cst_85 [0] : vector<20x16xf32> to vector<16xf32>
    %159 = vector.shape_cast %158 : vector<16xf32> to vector<1x16xf32>
    %160 = arith.divf %159, %156 : vector<1x16xf32>
    %161 = arith.addf %95, %160 : vector<1x16xf32>
    %cst_86 = arith.constant 0.000000e+00 : f32
    %162 = vector.broadcast %cst_86 : f32 to vector<1x16xf32>
    %163 = arith.subf %162, %161 : vector<1x16xf32>
    %164 = math.exp %163 : vector<1x16xf32>
    %cst_87 = arith.constant 1.000000e+00 : f32
    %165 = vector.broadcast %cst_87 : f32 to vector<1x16xf32>
    %166 = arith.addf %165, %164 : vector<1x16xf32>
    %cst_88 = arith.constant 1.000000e+00 : f32
    %167 = vector.broadcast %cst_88 : f32 to vector<1x16xf32>
    %168 = arith.divf %167, %166 : vector<1x16xf32>
    %cst_89 = arith.constant dense<0.000000e+00> : vector<1x32xf32>
    %169 = tpu.matmul %168, %6, %cst_89 {dimension_numbers = #tpu.dot_dimension_numbers<[1], [1], [0], [0], [0, 0, 1, 0], [], []>} : vector<1x16xf32>, vector<32x16xf32>, vector<1x32xf32> -> vector<1x32xf32>
    %170 = arith.addf %169, %7 : vector<1x32xf32>
    %cst_90 = arith.constant 0.000000e+00 : f32
    %171 = vector.broadcast %cst_90 : f32 to vector<1x32xf32>
    %172 = arith.cmpf ogt, %170, %171 : vector<1x32xf32>
    %173 = math.exp %170 : vector<1x32xf32>
    %cst_91 = arith.constant 1.000000e+00 : f32
    %174 = vector.broadcast %cst_91 : f32 to vector<1x32xf32>
    %175 = arith.subf %173, %174 : vector<1x32xf32>
    %176 = arith.select %172, %170, %175 : vector<1x32xi1>, vector<1x32xf32>
    %cst_92 = arith.constant dense<0.000000e+00> : vector<1x16xf32>
    %177 = tpu.matmul %176, %8, %cst_92 {dimension_numbers = #tpu.dot_dimension_numbers<[1], [1], [0], [0], [0, 0, 1, 0], [], []>} : vector<1x32xf32>, vector<16x32xf32>, vector<1x16xf32> -> vector<1x16xf32>
    %178 = arith.addf %177, %9 : vector<1x16xf32>
    %179 = arith.addf %178, %161 : vector<1x16xf32>
    %cst_93 = arith.constant 0.000000e+00 : f32
    %180 = vector.broadcast %cst_93 : f32 to vector<1x16xf32>
    %181 = arith.subf %180, %179 : vector<1x16xf32>
    %182 = math.exp %181 : vector<1x16xf32>
    %cst_94 = arith.constant 1.000000e+00 : f32
    %183 = vector.broadcast %cst_94 : f32 to vector<1x16xf32>
    %184 = arith.addf %183, %182 : vector<1x16xf32>
    %cst_95 = arith.constant 1.000000e+00 : f32
    %185 = vector.broadcast %cst_95 : f32 to vector<1x16xf32>
    %186 = arith.divf %185, %184 : vector<1x16xf32>
    %cst_96 = arith.constant dense<0.000000e+00> : vector<1x32xf32>
    %187 = tpu.matmul %186, %10, %cst_96 {dimension_numbers = #tpu.dot_dimension_numbers<[1], [1], [0], [0], [0, 0, 1, 0], [], []>} : vector<1x16xf32>, vector<32x16xf32>, vector<1x32xf32> -> vector<1x32xf32>
    %188 = arith.addf %187, %11 : vector<1x32xf32>
    %cst_97 = arith.constant 0.000000e+00 : f32
    %189 = vector.broadcast %cst_97 : f32 to vector<1x32xf32>
    %190 = arith.cmpf ogt, %188, %189 : vector<1x32xf32>
    %191 = math.exp %188 : vector<1x32xf32>
    %cst_98 = arith.constant 1.000000e+00 : f32
    %192 = vector.broadcast %cst_98 : f32 to vector<1x32xf32>
    %193 = arith.subf %191, %192 : vector<1x32xf32>
    %194 = arith.select %190, %188, %193 : vector<1x32xi1>, vector<1x32xf32>
    %cst_99 = arith.constant dense<0.000000e+00> : vector<1x16xf32>
    %195 = tpu.matmul %194, %12, %cst_99 {dimension_numbers = #tpu.dot_dimension_numbers<[1], [1], [0], [0], [0, 0, 1, 0], [], []>} : vector<1x32xf32>, vector<16x32xf32>, vector<1x16xf32> -> vector<1x16xf32>
    %196 = arith.addf %195, %13 : vector<1x16xf32>
    %197 = arith.addf %196, %179 : vector<1x16xf32>
    %c0_100 = arith.constant 0 : index
    %c0_101 = arith.constant 0 : index
    %198 = vector.load %arg21[%c0_100, %c0_101] : memref<2x16xf32, #tpu.memory_space<vmem>>, vector<1x16xf32>
    tpu.vector_store %arg21[%c0_100, %c0_101], %197 {strides = array<i32>} : memref<2x16xf32, #tpu.memory_space<vmem>>, vector<1x16xf32>,
    %c1 = arith.constant 1 : index
    %c0_102 = arith.constant 0 : index
    %c0_103 = arith.constant 0 : index
    %199 = vector.load %arg6[%c1, %c0_102, %c0_103] : memref<4x32x32xf32, #tpu.memory_space<vmem>>, vector<1x32x32xf32>
    %200 = vector.shape_cast %199 : vector<1x32x32xf32> to vector<32x32xf32>
    %201 = vector.extract_strided_slice %200 {offsets = [0, 0], sizes = [32, 30], strides = [1, 1]} : vector<32x32xf32> to vector<32x30xf32>
    %202 = vector.extract_strided_slice %200 {offsets = [0, 1], sizes = [32, 30], strides = [1, 1]} : vector<32x32xf32> to vector<32x30xf32>
    %203 = vector.extract_strided_slice %200 {offsets = [0, 2], sizes = [32, 30], strides = [1, 1]} : vector<32x32xf32> to vector<32x30xf32>
    %204 = tpu.concatenate %201, %202, %203 in 0 : vector<32x30xf32>, vector<32x30xf32>, vector<32x30xf32> -> vector<96x30xf32>
    %cst_104 = arith.constant dense<0.000000e+00> : vector<32x30xf32>
    %205 = tpu.matmul %0, %204, %cst_104 {dimension_numbers = #tpu.dot_dimension_numbers<[1], [0], [0], [1], [0, 0, 1, 1], [], []>} : vector<32x96xf32>, vector<96x30xf32>, vector<32x30xf32> -> vector<32x30xf32>
    %206 = vector.broadcast %1 : vector<32x1xf32> to vector<32x30xf32>
    %207 = arith.addf %205, %206 : vector<32x30xf32>
    %cst_105 = arith.constant 0.000000e+00 : f32
    %208 = vector.broadcast %cst_105 : f32 to vector<32x30xf32>
    %209 = arith.cmpf ogt, %207, %208 : vector<32x30xf32>
    %210 = math.exp %207 : vector<32x30xf32>
    %cst_106 = arith.constant 1.000000e+00 : f32
    %211 = vector.broadcast %cst_106 : f32 to vector<32x30xf32>
    %212 = arith.subf %210, %211 : vector<32x30xf32>
    %cst_107 = arith.constant 1.67326319 : f32
    %213 = vector.broadcast %cst_107 : f32 to vector<32x30xf32>
    %214 = arith.mulf %213, %212 : vector<32x30xf32>
    %215 = arith.select %209, %207, %214 : vector<32x30xi1>, vector<32x30xf32>
    %cst_108 = arith.constant 1.05070102 : f32
    %216 = vector.broadcast %cst_108 : f32 to vector<32x30xf32>
    %217 = arith.mulf %216, %215 : vector<32x30xf32>
    %218 = vector.extract_strided_slice %217 {offsets = [0, 0], sizes = [32, 26], strides = [1, 1]} : vector<32x30xf32> to vector<32x26xf32>
    %219 = vector.extract_strided_slice %217 {offsets = [0, 2], sizes = [32, 26], strides = [1, 1]} : vector<32x30xf32> to vector<32x26xf32>
    %220 = vector.extract_strided_slice %217 {offsets = [0, 4], sizes = [32, 26], strides = [1, 1]} : vector<32x30xf32> to vector<32x26xf32>
    %221 = tpu.concatenate %218, %219, %220 in 0 : vector<32x26xf32>, vector<32x26xf32>, vector<32x26xf32> -> vector<96x26xf32>
    %cst_109 = arith.constant dense<0.000000e+00> : vector<32x26xf32>
    %222 = tpu.matmul %2, %221, %cst_109 {dimension_numbers = #tpu.dot_dimension_numbers<[1], [0], [0], [1], [0, 0, 1, 1], [], []>} : vector<32x96xf32>, vector<96x26xf32>, vector<32x26xf32> -> vector<32x26xf32>
    %223 = vector.broadcast %3 : vector<32x1xf32> to vector<32x26xf32>
    %224 = arith.addf %222, %223 : vector<32x26xf32>
    %cst_110 = arith.constant 0.000000e+00 : f32
    %225 = vector.broadcast %cst_110 : f32 to vector<32x26xf32>
    %226 = arith.cmpf ogt, %224, %225 : vector<32x26xf32>
    %227 = math.exp %224 : vector<32x26xf32>
    %cst_111 = arith.constant 1.000000e+00 : f32
    %228 = vector.broadcast %cst_111 : f32 to vector<32x26xf32>
    %229 = arith.subf %227, %228 : vector<32x26xf32>
    %cst_112 = arith.constant 1.67326319 : f32
    %230 = vector.broadcast %cst_112 : f32 to vector<32x26xf32>
    %231 = arith.mulf %230, %229 : vector<32x26xf32>
    %232 = arith.select %226, %224, %231 : vector<32x26xi1>, vector<32x26xf32>
    %cst_113 = arith.constant 1.05070102 : f32
    %233 = vector.broadcast %cst_113 : f32 to vector<32x26xf32>
    %234 = arith.mulf %233, %232 : vector<32x26xf32>
    %235 = vector.extract_strided_slice %234 {offsets = [0, 0], sizes = [32, 20], strides = [1, 1]} : vector<32x26xf32> to vector<32x20xf32>
    %236 = vector.extract_strided_slice %234 {offsets = [0, 3], sizes = [32, 20], strides = [1, 1]} : vector<32x26xf32> to vector<32x20xf32>
    %237 = vector.extract_strided_slice %234 {offsets = [0, 6], sizes = [32, 20], strides = [1, 1]} : vector<32x26xf32> to vector<32x20xf32>
    %238 = tpu.concatenate %235, %236, %237 in 0 : vector<32x20xf32>, vector<32x20xf32>, vector<32x20xf32> -> vector<96x20xf32>
    %cst_114 = arith.constant dense<0.000000e+00> : vector<32x20xf32>
    %239 = tpu.matmul %4, %238, %cst_114 {dimension_numbers = #tpu.dot_dimension_numbers<[1], [0], [0], [1], [0, 0, 1, 1], [], []>} : vector<32x96xf32>, vector<96x20xf32>, vector<32x20xf32> -> vector<32x20xf32>
    %240 = vector.broadcast %5 : vector<32x1xf32> to vector<32x20xf32>
    %241 = arith.addf %239, %240 : vector<32x20xf32>
    %cst_115 = arith.constant 0.000000e+00 : f32
    %242 = vector.broadcast %cst_115 : f32 to vector<32x20xf32>
    %243 = arith.cmpf ogt, %241, %242 : vector<32x20xf32>
    %244 = math.exp %241 : vector<32x20xf32>
    %cst_116 = arith.constant 1.000000e+00 : f32
    %245 = vector.broadcast %cst_116 : f32 to vector<32x20xf32>
    %246 = arith.subf %244, %245 : vector<32x20xf32>
    %cst_117 = arith.constant 1.67326319 : f32
    %247 = vector.broadcast %cst_117 : f32 to vector<32x20xf32>
    %248 = arith.mulf %247, %246 : vector<32x20xf32>
    %249 = arith.select %243, %241, %248 : vector<32x20xi1>, vector<32x20xf32>
    %cst_118 = arith.constant 1.05070102 : f32
    %250 = vector.broadcast %cst_118 : f32 to vector<32x20xf32>
    %251 = arith.mulf %250, %249 : vector<32x20xf32>
    %cst_119 = arith.constant dense<0.000000e+00> : vector<20x16xf32>
    %252 = tpu.matmul %251, %30, %cst_119 {dimension_numbers = #tpu.dot_dimension_numbers<[0], [1], [1], [0], [0, 1, 1, 0], [], []>} : vector<32x20xf32>, vector<16x32xf32>, vector<20x16xf32> -> vector<20x16xf32>
    %cst_120 = arith.constant dense<0xFF800000> : vector<16xf32>
    %253 = vector.multi_reduction <maximumf>, %252, %cst_120 [0] : vector<20x16xf32> to vector<16xf32>
    %254 = vector.shape_cast %253 : vector<16xf32> to vector<1x16xf32>
    %255 = vector.broadcast %254 : vector<1x16xf32> to vector<20x16xf32>
    %256 = arith.subf %252, %255 : vector<20x16xf32>
    %257 = math.exp %256 : vector<20x16xf32>
    %cst_121 = arith.constant dense<0.000000e+00> : vector<16xf32>
    %258 = vector.multi_reduction <add>, %257, %cst_121 [0] : vector<20x16xf32> to vector<16xf32>
    %259 = vector.shape_cast %258 : vector<16xf32> to vector<1x16xf32>
    %260 = arith.mulf %257, %252 : vector<20x16xf32>
    %cst_122 = arith.constant dense<0.000000e+00> : vector<16xf32>
    %261 = vector.multi_reduction <add>, %260, %cst_122 [0] : vector<20x16xf32> to vector<16xf32>
    %262 = vector.shape_cast %261 : vector<16xf32> to vector<1x16xf32>
    %263 = arith.divf %262, %259 : vector<1x16xf32>
    %c3 = arith.constant 3 : index
    %c0_123 = arith.constant 0 : index
    %c0_124 = arith.constant 0 : index
    %264 = vector.load %arg6[%c3, %c0_123, %c0_124] : memref<4x32x32xf32, #tpu.memory_space<vmem>>, vector<1x32x32xf32>
    %265 = vector.shape_cast %264 : vector<1x32x32xf32> to vector<32x32xf32>
    %266 = vector.extract_strided_slice %265 {offsets = [0, 0], sizes = [32, 30], strides = [1, 1]} : vector<32x32xf32> to vector<32x30xf32>
    %267 = vector.extract_strided_slice %265 {offsets = [0, 1], sizes = [32, 30], strides = [1, 1]} : vector<32x32xf32> to vector<32x30xf32>
    %268 = vector.extract_strided_slice %265 {offsets = [0, 2], sizes = [32, 30], strides = [1, 1]} : vector<32x32xf32> to vector<32x30xf32>
    %269 = tpu.concatenate %266, %267, %268 in 0 : vector<32x30xf32>, vector<32x30xf32>, vector<32x30xf32> -> vector<96x30xf32>
    %cst_125 = arith.constant dense<0.000000e+00> : vector<32x30xf32>
    %270 = tpu.matmul %0, %269, %cst_125 {dimension_numbers = #tpu.dot_dimension_numbers<[1], [0], [0], [1], [0, 0, 1, 1], [], []>} : vector<32x96xf32>, vector<96x30xf32>, vector<32x30xf32> -> vector<32x30xf32>
    %271 = vector.broadcast %1 : vector<32x1xf32> to vector<32x30xf32>
    %272 = arith.addf %270, %271 : vector<32x30xf32>
    %cst_126 = arith.constant 0.000000e+00 : f32
    %273 = vector.broadcast %cst_126 : f32 to vector<32x30xf32>
    %274 = arith.cmpf ogt, %272, %273 : vector<32x30xf32>
    %275 = math.exp %272 : vector<32x30xf32>
    %cst_127 = arith.constant 1.000000e+00 : f32
    %276 = vector.broadcast %cst_127 : f32 to vector<32x30xf32>
    %277 = arith.subf %275, %276 : vector<32x30xf32>
    %cst_128 = arith.constant 1.67326319 : f32
    %278 = vector.broadcast %cst_128 : f32 to vector<32x30xf32>
    %279 = arith.mulf %278, %277 : vector<32x30xf32>
    %280 = arith.select %274, %272, %279 : vector<32x30xi1>, vector<32x30xf32>
    %cst_129 = arith.constant 1.05070102 : f32
    %281 = vector.broadcast %cst_129 : f32 to vector<32x30xf32>
    %282 = arith.mulf %281, %280 : vector<32x30xf32>
    %283 = vector.extract_strided_slice %282 {offsets = [0, 0], sizes = [32, 26], strides = [1, 1]} : vector<32x30xf32> to vector<32x26xf32>
    %284 = vector.extract_strided_slice %282 {offsets = [0, 2], sizes = [32, 26], strides = [1, 1]} : vector<32x30xf32> to vector<32x26xf32>
    %285 = vector.extract_strided_slice %282 {offsets = [0, 4], sizes = [32, 26], strides = [1, 1]} : vector<32x30xf32> to vector<32x26xf32>
    %286 = tpu.concatenate %283, %284, %285 in 0 : vector<32x26xf32>, vector<32x26xf32>, vector<32x26xf32> -> vector<96x26xf32>
    %cst_130 = arith.constant dense<0.000000e+00> : vector<32x26xf32>
    %287 = tpu.matmul %2, %286, %cst_130 {dimension_numbers = #tpu.dot_dimension_numbers<[1], [0], [0], [1], [0, 0, 1, 1], [], []>} : vector<32x96xf32>, vector<96x26xf32>, vector<32x26xf32> -> vector<32x26xf32>
    %288 = vector.broadcast %3 : vector<32x1xf32> to vector<32x26xf32>
    %289 = arith.addf %287, %288 : vector<32x26xf32>
    %cst_131 = arith.constant 0.000000e+00 : f32
    %290 = vector.broadcast %cst_131 : f32 to vector<32x26xf32>
    %291 = arith.cmpf ogt, %289, %290 : vector<32x26xf32>
    %292 = math.exp %289 : vector<32x26xf32>
    %cst_132 = arith.constant 1.000000e+00 : f32
    %293 = vector.broadcast %cst_132 : f32 to vector<32x26xf32>
    %294 = arith.subf %292, %293 : vector<32x26xf32>
    %cst_133 = arith.constant 1.67326319 : f32
    %295 = vector.broadcast %cst_133 : f32 to vector<32x26xf32>
    %296 = arith.mulf %295, %294 : vector<32x26xf32>
    %297 = arith.select %291, %289, %296 : vector<32x26xi1>, vector<32x26xf32>
    %cst_134 = arith.constant 1.05070102 : f32
    %298 = vector.broadcast %cst_134 : f32 to vector<32x26xf32>
    %299 = arith.mulf %298, %297 : vector<32x26xf32>
    %300 = vector.extract_strided_slice %299 {offsets = [0, 0], sizes = [32, 20], strides = [1, 1]} : vector<32x26xf32> to vector<32x20xf32>
    %301 = vector.extract_strided_slice %299 {offsets = [0, 3], sizes = [32, 20], strides = [1, 1]} : vector<32x26xf32> to vector<32x20xf32>
    %302 = vector.extract_strided_slice %299 {offsets = [0, 6], sizes = [32, 20], strides = [1, 1]} : vector<32x26xf32> to vector<32x20xf32>
    %303 = tpu.concatenate %300, %301, %302 in 0 : vector<32x20xf32>, vector<32x20xf32>, vector<32x20xf32> -> vector<96x20xf32>
    %cst_135 = arith.constant dense<0.000000e+00> : vector<32x20xf32>
    %304 = tpu.matmul %4, %303, %cst_135 {dimension_numbers = #tpu.dot_dimension_numbers<[1], [0], [0], [1], [0, 0, 1, 1], [], []>} : vector<32x96xf32>, vector<96x20xf32>, vector<32x20xf32> -> vector<32x20xf32>
    %305 = vector.broadcast %5 : vector<32x1xf32> to vector<32x20xf32>
    %306 = arith.addf %304, %305 : vector<32x20xf32>
    %cst_136 = arith.constant 0.000000e+00 : f32
    %307 = vector.broadcast %cst_136 : f32 to vector<32x20xf32>
    %308 = arith.cmpf ogt, %306, %307 : vector<32x20xf32>
    %309 = math.exp %306 : vector<32x20xf32>
    %cst_137 = arith.constant 1.000000e+00 : f32
    %310 = vector.broadcast %cst_137 : f32 to vector<32x20xf32>
    %311 = arith.subf %309, %310 : vector<32x20xf32>
    %cst_138 = arith.constant 1.67326319 : f32
    %312 = vector.broadcast %cst_138 : f32 to vector<32x20xf32>
    %313 = arith.mulf %312, %311 : vector<32x20xf32>
    %314 = arith.select %308, %306, %313 : vector<32x20xi1>, vector<32x20xf32>
    %cst_139 = arith.constant 1.05070102 : f32
    %315 = vector.broadcast %cst_139 : f32 to vector<32x20xf32>
    %316 = arith.mulf %315, %314 : vector<32x20xf32>
    %cst_140 = arith.constant dense<0.000000e+00> : vector<20x16xf32>
    %317 = tpu.matmul %316, %30, %cst_140 {dimension_numbers = #tpu.dot_dimension_numbers<[0], [1], [1], [0], [0, 1, 1, 0], [], []>} : vector<32x20xf32>, vector<16x32xf32>, vector<20x16xf32> -> vector<20x16xf32>
    %cst_141 = arith.constant dense<0xFF800000> : vector<16xf32>
    %318 = vector.multi_reduction <maximumf>, %317, %cst_141 [0] : vector<20x16xf32> to vector<16xf32>
    %319 = vector.shape_cast %318 : vector<16xf32> to vector<1x16xf32>
    %320 = vector.broadcast %319 : vector<1x16xf32> to vector<20x16xf32>
    %321 = arith.subf %317, %320 : vector<20x16xf32>
    %322 = math.exp %321 : vector<20x16xf32>
    %cst_142 = arith.constant dense<0.000000e+00> : vector<16xf32>
    %323 = vector.multi_reduction <add>, %322, %cst_142 [0] : vector<20x16xf32> to vector<16xf32>
    %324 = vector.shape_cast %323 : vector<16xf32> to vector<1x16xf32>
    %325 = arith.mulf %322, %317 : vector<20x16xf32>
    %cst_143 = arith.constant dense<0.000000e+00> : vector<16xf32>
    %326 = vector.multi_reduction <add>, %325, %cst_143 [0] : vector<20x16xf32> to vector<16xf32>
    %327 = vector.shape_cast %326 : vector<16xf32> to vector<1x16xf32>
    %328 = arith.divf %327, %324 : vector<1x16xf32>
    %329 = arith.addf %263, %328 : vector<1x16xf32>
    %cst_144 = arith.constant 0.000000e+00 : f32
    %330 = vector.broadcast %cst_144 : f32 to vector<1x16xf32>
    %331 = arith.subf %330, %329 : vector<1x16xf32>
    %332 = math.exp %331 : vector<1x16xf32>
    %cst_145 = arith.constant 1.000000e+00 : f32
    %333 = vector.broadcast %cst_145 : f32 to vector<1x16xf32>
    %334 = arith.addf %333, %332 : vector<1x16xf32>
    %cst_146 = arith.constant 1.000000e+00 : f32
    %335 = vector.broadcast %cst_146 : f32 to vector<1x16xf32>
    %336 = arith.divf %335, %334 : vector<1x16xf32>
    %cst_147 = arith.constant dense<0.000000e+00> : vector<1x32xf32>
    %337 = tpu.matmul %336, %6, %cst_147 {dimension_numbers = #tpu.dot_dimension_numbers<[1], [1], [0], [0], [0, 0, 1, 0], [], []>} : vector<1x16xf32>, vector<32x16xf32>, vector<1x32xf32> -> vector<1x32xf32>
    %338 = arith.addf %337, %7 : vector<1x32xf32>
    %cst_148 = arith.constant 0.000000e+00 : f32
    %339 = vector.broadcast %cst_148 : f32 to vector<1x32xf32>
    %340 = arith.cmpf ogt, %338, %339 : vector<1x32xf32>
    %341 = math.exp %338 : vector<1x32xf32>
    %cst_149 = arith.constant 1.000000e+00 : f32
    %342 = vector.broadcast %cst_149 : f32 to vector<1x32xf32>
    %343 = arith.subf %341, %342 : vector<1x32xf32>
    %344 = arith.select %340, %338, %343 : vector<1x32xi1>, vector<1x32xf32>
    %cst_150 = arith.constant dense<0.000000e+00> : vector<1x16xf32>
    %345 = tpu.matmul %344, %8, %cst_150 {dimension_numbers = #tpu.dot_dimension_numbers<[1], [1], [0], [0], [0, 0, 1, 0], [], []>} : vector<1x32xf32>, vector<16x32xf32>, vector<1x16xf32> -> vector<1x16xf32>
    %346 = arith.addf %345, %9 : vector<1x16xf32>
    %347 = arith.addf %346, %329 : vector<1x16xf32>
    %cst_151 = arith.constant 0.000000e+00 : f32
    %348 = vector.broadcast %cst_151 : f32 to vector<1x16xf32>
    %349 = arith.subf %348, %347 : vector<1x16xf32>
    %350 = math.exp %349 : vector<1x16xf32>
    %cst_152 = arith.constant 1.000000e+00 : f32
    %351 = vector.broadcast %cst_152 : f32 to vector<1x16xf32>
    %352 = arith.addf %351, %350 : vector<1x16xf32>
    %cst_153 = arith.constant 1.000000e+00 : f32
    %353 = vector.broadcast %cst_153 : f32 to vector<1x16xf32>
    %354 = arith.divf %353, %352 : vector<1x16xf32>
    %cst_154 = arith.constant dense<0.000000e+00> : vector<1x32xf32>
    %355 = tpu.matmul %354, %10, %cst_154 {dimension_numbers = #tpu.dot_dimension_numbers<[1], [1], [0], [0], [0, 0, 1, 0], [], []>} : vector<1x16xf32>, vector<32x16xf32>, vector<1x32xf32> -> vector<1x32xf32>
    %356 = arith.addf %355, %11 : vector<1x32xf32>
    %cst_155 = arith.constant 0.000000e+00 : f32
    %357 = vector.broadcast %cst_155 : f32 to vector<1x32xf32>
    %358 = arith.cmpf ogt, %356, %357 : vector<1x32xf32>
    %359 = math.exp %356 : vector<1x32xf32>
    %cst_156 = arith.constant 1.000000e+00 : f32
    %360 = vector.broadcast %cst_156 : f32 to vector<1x32xf32>
    %361 = arith.subf %359, %360 : vector<1x32xf32>
    %362 = arith.select %358, %356, %361 : vector<1x32xi1>, vector<1x32xf32>
    %cst_157 = arith.constant dense<0.000000e+00> : vector<1x16xf32>
    %363 = tpu.matmul %362, %12, %cst_157 {dimension_numbers = #tpu.dot_dimension_numbers<[1], [1], [0], [0], [0, 0, 1, 0], [], []>} : vector<1x32xf32>, vector<16x32xf32>, vector<1x16xf32> -> vector<1x16xf32>
    %364 = arith.addf %363, %13 : vector<1x16xf32>
    %365 = arith.addf %364, %347 : vector<1x16xf32>
    %c1_158 = arith.constant 1 : index
    %c0_159 = arith.constant 0 : index
    %366 = vector.load %arg21[%c1_158, %c0_159] : memref<2x16xf32, #tpu.memory_space<vmem>>, vector<1x16xf32>
    tpu.vector_store %arg21[%c1_158, %c0_159], %365 {strides = array<i32>} : memref<2x16xf32, #tpu.memory_space<vmem>>, vector<1x16xf32>,
    return
  }
}

</mosaic_0001>

<llo_original>
// kernel: pallas_forward.1
$region0: #{pallas_forward.1}
  #allocation0 [shape = 'u32[]', space=smem, size = 0x4, offset = 0x4, fixed_abs, tag = 'smem constant byte address 0x4 - core index']
  #allocation1 [shape = 'u32[72,128]{1,0:T(1,128)}', space=vmem, size = 0x9000, scoped, tag = 'internal scratch']
  %s0 = inlined_call_operand.vmem [shape: f32[16,16], index: 0, kind: input, shape index: {}]
  %s1 = inlined_call_operand.vmem [shape: f32[16,32], index: 1, kind: input, shape index: {}]
  %s2 = inlined_call_operand.vmem [shape: f32[32,32], index: 2, kind: input, shape index: {}]
  %s3 = inlined_call_operand.vmem [shape: f32[1,32], index: 3, kind: input, shape index: {}]
  %s4 = inlined_call_operand.vmem [shape: f32[32,32], index: 4, kind: input, shape index: {}]
  %s5 = inlined_call_operand.vmem [shape: f32[1,32], index: 5, kind: input, shape index: {}]
  %s6 = inlined_call_operand.vmem [shape: f32[4,32,32], index: 6, kind: input, shape index: {}]
  %s7 = inlined_call_operand.vmem [shape: f32[32,96], index: 7, kind: input, shape index: {}]
  %s8 = inlined_call_operand.vmem [shape: f32[32,1], index: 8, kind: input, shape index: {}]
  %s9 = inlined_call_operand.vmem [shape: f32[32,96], index: 9, kind: input, shape index: {}]
  %s10 = inlined_call_operand.vmem [shape: f32[32,1], index: 10, kind: input, shape index: {}]
  %s11 = inlined_call_operand.vmem [shape: f32[32,96], index: 11, kind: input, shape index: {}]
  %s12 = inlined_call_operand.vmem [shape: f32[32,1], index: 12, kind: input, shape index: {}]
  %s13 = inlined_call_operand.vmem [shape: f32[32,16], index: 13, kind: input, shape index: {}]
  %s14 = inlined_call_operand.vmem [shape: f32[1,32], index: 14, kind: input, shape index: {}]
  %s15 = inlined_call_operand.vmem [shape: f32[16,32], index: 15, kind: input, shape index: {}]
  %s16 = inlined_call_operand.vmem [shape: f32[1,16], index: 16, kind: input, shape index: {}]
  %s17 = inlined_call_operand.vmem [shape: f32[32,16], index: 17, kind: input, shape index: {}]
  %s18 = inlined_call_operand.vmem [shape: f32[1,32], index: 18, kind: input, shape index: {}]
  %s19 = inlined_call_operand.vmem [shape: f32[16,32], index: 19, kind: input, shape index: {}]
  %s20 = inlined_call_operand.vmem [shape: f32[1,16], index: 20, kind: input, shape index: {}]
  %s21 = inlined_call_operand.hbm [shape: f32[2,16], index: 21, kind: output, shape index: {}]
  %s22 = sld [smem:[#allocation0]]
  $region94: #{pallas_forward.1} parent=0
    _
  %s24 = ssub.s32 1, %s22
  %s25 = scalar_select 0, %s24, %s22
  $region1: #{pallas_forward.1} parent=0
    #allocation2 [shape = 'u8[1024]{0}', space=vmem, size = 0x400, scoped, tag = 'output window, operand 0, single buffered']
    #allocation3 [shape = 's32[1]{0}', space=sflag, size = 0x4, scoped, tag = 'scoped memory for pallas_forward.1']
    %26 = vsyncpa [#allocation3], 0
    // Predicated region
    $region2: #{pallas_forward.1} parent=1 // pred_check
      _
    $region3: #{pallas_forward.1} parent=1 // pred_check_branch
      %28 = sbr.rel (0) target = $region5
    $region4: #{pallas_forward.1} parent=1 // pred_region
      _
    $region5: #{pallas_forward.1} parent=1 // pred_fallthru
      _
    // Predicated region
    $region6: #{pallas_forward.1} parent=1 // pred_check
      _
    $region7: #{pallas_forward.1} parent=1 // pred_check_branch
      %30 = sbr.rel (0) target = $region9
    $region8: #{pallas_forward.1} parent=1 // pred_region
      _
    $region9: #{pallas_forward.1} parent=1 // pred_fallthru
      _
    // Predicated region
    $region10: #{pallas_forward.1} parent=1 // pred_check
      _
    $region11: #{pallas_forward.1} parent=1 // pred_check_branch
      %32 = sbr.rel (0) target = $region13
    $region12: #{pallas_forward.1} parent=1 // pred_region
      _
    $region13: #{pallas_forward.1} parent=1 // pred_fallthru
      _
    // Predicated region
    $region14: #{pallas_forward.1} parent=1 // pred_check
      _
    $region15: #{pallas_forward.1} parent=1 // pred_check_branch
      %34 = sbr.rel (0) target = $region17
    $region16: #{pallas_forward.1} parent=1 // pred_region
      _
    $region17: #{pallas_forward.1} parent=1 // pred_fallthru
      _
    // Predicated region
    $region18: #{pallas_forward.1} parent=1 // pred_check
      _
    $region19: #{pallas_forward.1} parent=1 // pred_check_branch
      %36 = sbr.rel (0) target = $region21
    $region20: #{pallas_forward.1} parent=1 // pred_region
      _
    $region21: #{pallas_forward.1} parent=1 // pred_fallthru
      _
    // Predicated region
    $region22: #{pallas_forward.1} parent=1 // pred_check
      _
    $region23: #{pallas_forward.1} parent=1 // pred_check_branch
      %38 = sbr.rel (0) target = $region25
    $region24: #{pallas_forward.1} parent=1 // pred_region
      _
    $region25: #{pallas_forward.1} parent=1 // pred_fallthru
      _
    // Predicated region
    $region26: #{pallas_forward.1} parent=1 // pred_check
      _
    $region27: #{pallas_forward.1} parent=1 // pred_check_branch
      %40 = sbr.rel (0) target = $region29
    $region28: #{pallas_forward.1} parent=1 // pred_region
      _
    $region29: #{pallas_forward.1} parent=1 // pred_fallthru
      _
    // Predicated region
    $region30: #{pallas_forward.1} parent=1 // pred_check
      _
    $region31: #{pallas_forward.1} parent=1 // pred_check_branch
      %42 = sbr.rel (0) target = $region33
    $region32: #{pallas_forward.1} parent=1 // pred_region
      _
    $region33: #{pallas_forward.1} parent=1 // pred_fallthru
      _
    // Predicated region
    $region34: #{pallas_forward.1} parent=1 // pred_check
      _
    $region35: #{pallas_forward.1} parent=1 // pred_check_branch
      %44 = sbr.rel (0) target = $region37
    $region36: #{pallas_forward.1} parent=1 // pred_region
      _
    $region37: #{pallas_forward.1} parent=1 // pred_fallthru
      _
    // Predicated region
    $region38: #{pallas_forward.1} parent=1 // pred_check
      _
    $region39: #{pallas_forward.1} parent=1 // pred_check_branch
      %46 = sbr.rel (0) target = $region41
    $region40: #{pallas_forward.1} parent=1 // pred_region
      _
    $region41: #{pallas_forward.1} parent=1 // pred_fallthru
      _
    // Predicated region
    $region42: #{pallas_forward.1} parent=1 // pred_check
      _
    $region43: #{pallas_forward.1} parent=1 // pred_check_branch
      %48 = sbr.rel (0) target = $region45
    $region44: #{pallas_forward.1} parent=1 // pred_region
      _
    $region45: #{pallas_forward.1} parent=1 // pred_fallthru
      _
    // Predicated region
    $region46: #{pallas_forward.1} parent=1 // pred_check
      _
    $region47: #{pallas_forward.1} parent=1 // pred_check_branch
      %50 = sbr.rel (0) target = $region49
    $region48: #{pallas_forward.1} parent=1 // pred_region
      _
    $region49: #{pallas_forward.1} parent=1 // pred_fallthru
      _
    // Predicated region
    $region50: #{pallas_forward.1} parent=1 // pred_check
      _
    $region51: #{pallas_forward.1} parent=1 // pred_check_branch
      %52 = sbr.rel (0) target = $region53
    $region52: #{pallas_forward.1} parent=1 // pred_region
      _
    $region53: #{pallas_forward.1} parent=1 // pred_fallthru
      _
    // Predicated region
    $region54: #{pallas_forward.1} parent=1 // pred_check
      _
    $region55: #{pallas_forward.1} parent=1 // pred_check_branch
      %54 = sbr.rel (0) target = $region57
    $region56: #{pallas_forward.1} parent=1 // pred_region
      _
    $region57: #{pallas_forward.1} parent=1 // pred_fallthru
      _
    // Predicated region
    $region58: #{pallas_forward.1} parent=1 // pred_check
      _
    $region59: #{pallas_forward.1} parent=1 // pred_check_branch
      %56 = sbr.rel (0) target = $region61
    $region60: #{pallas_forward.1} parent=1 // pred_region
      _
    $region61: #{pallas_forward.1} parent=1 // pred_fallthru
      _
    // Predicated region
    $region62: #{pallas_forward.1} parent=1 // pred_check
      _
    $region63: #{pallas_forward.1} parent=1 // pred_check_branch
      %58 = sbr.rel (0) target = $region65
    $region64: #{pallas_forward.1} parent=1 // pred_region
      _
    $region65: #{pallas_forward.1} parent=1 // pred_fallthru
      _
    // Predicated region
    $region66: #{pallas_forward.1} parent=1 // pred_check
      _
    $region67: #{pallas_forward.1} parent=1 // pred_check_branch
      %60 = sbr.rel (0) target = $region69
    $region68: #{pallas_forward.1} parent=1 // pred_region
      _
    $region69: #{pallas_forward.1} parent=1 // pred_fallthru
      _
    // Predicated region
    $region70: #{pallas_forward.1} parent=1 // pred_check
      _
    $region71: #{pallas_forward.1} parent=1 // pred_check_branch
      %62 = sbr.rel (0) target = $region73
    $region72: #{pallas_forward.1} parent=1 // pred_region
      _
    $region73: #{pallas_forward.1} parent=1 // pred_fallthru
      _
    // Predicated region
    $region74: #{pallas_forward.1} parent=1 // pred_check
      _
    $region75: #{pallas_forward.1} parent=1 // pred_check_branch
      %64 = sbr.rel (0) target = $region77
    $region76: #{pallas_forward.1} parent=1 // pred_region
      _
    $region77: #{pallas_forward.1} parent=1 // pred_fallthru
      _
    // Predicated region
    $region78: #{pallas_forward.1} parent=1 // pred_check
      _
    $region79: #{pallas_forward.1} parent=1 // pred_check_branch
      %66 = sbr.rel (0) target = $region81
    $region80: #{pallas_forward.1} parent=1 // pred_region
      _
    $region81: #{pallas_forward.1} parent=1 // pred_fallthru
      _
    // Predicated region
    $region82: #{pallas_forward.1} parent=1 // pred_check
      _
    $region83: #{pallas_forward.1} parent=1 // pred_check_branch
      %68 = sbr.rel (0) target = $region85
    $region84: #{pallas_forward.1} parent=1 // pred_region
      _
    $region85: #{pallas_forward.1} parent=1 // pred_fallthru
      _
    %v69 = vld [vmem:[%s7] sm:$0xff]
    %v70 = vld [vmem:[%s7 + $0x8] sm:$0xff]
    %v71 = vld [vmem:[%s7 + $0x10] sm:$0xff]
    %v72 = vld [vmem:[%s7 + $0x18] sm:$0xff]
    %v73 = vld [vmem:[%s8] sm:$0xff]
    %v74 = vld [vmem:[%s8 + $0x8] sm:$0xff]
    %v75 = vld [vmem:[%s8 + $0x10] sm:$0xff]
    %v76 = vld [vmem:[%s8 + $0x18] sm:$0xff]
    %v77 = vld [vmem:[%s9] sm:$0xff]
    %v78 = vld [vmem:[%s9 + $0x8] sm:$0xff]
    %v79 = vld [vmem:[%s9 + $0x10] sm:$0xff]
    %v80 = vld [vmem:[%s9 + $0x18] sm:$0xff]
    %v81 = vld [vmem:[%s10] sm:$0xff]
    %v82 = vld [vmem:[%s10 + $0x8] sm:$0xff]
    %v83 = vld [vmem:[%s10 + $0x10] sm:$0xff]
    %v84 = vld [vmem:[%s10 + $0x18] sm:$0xff]
    %v85 = vld [vmem:[%s11] sm:$0xff]
    %v86 = vld [vmem:[%s11 + $0x8] sm:$0xff]
    %v87 = vld [vmem:[%s11 + $0x10] sm:$0xff]
    %v88 = vld [vmem:[%s11 + $0x18] sm:$0xff]
    %v89 = vld [vmem:[%s12] sm:$0xff]
    %v90 = vld [vmem:[%s12 + $0x8] sm:$0xff]
    %v91 = vld [vmem:[%s12 + $0x10] sm:$0xff]
    %v92 = vld [vmem:[%s12 + $0x18] sm:$0xff]
    %v93 = vld [vmem:[%s13] sm:$0xff]
    %v94 = vld [vmem:[%s13 + $0x8] sm:$0xff]
    %v95 = vld [vmem:[%s13 + $0x10] sm:$0xff]
    %v96 = vld [vmem:[%s13 + $0x18] sm:$0xff]
    %v97 = vld [vmem:[%s14] sm:$0x1]
    %v98 = vld [vmem:[%s15] sm:$0xff]
    %v99 = vld [vmem:[%s15 + $0x8] sm:$0xff]
    %v100 = vld [vmem:[%s16] sm:$0x1]
    %v101 = vld [vmem:[%s17] sm:$0xff]
    %v102 = vld [vmem:[%s17 + $0x8] sm:$0xff]
    %v103 = vld [vmem:[%s17 + $0x10] sm:$0xff]
    %v104 = vld [vmem:[%s17 + $0x18] sm:$0xff]
    %v105 = vld [vmem:[%s18] sm:$0x1]
    %v106 = vld [vmem:[%s19] sm:$0xff]
    %v107 = vld [vmem:[%s19 + $0x8] sm:$0xff]
    %v108 = vld [vmem:[%s20] sm:$0x1]
    %v109 = vld [vmem:[%s0] sm:$0xff]
    %v110 = vld [vmem:[%s0 + $0x8] sm:$0xff]
    %v111 = vld [vmem:[%s1] sm:$0xff]
    %v112 = vld [vmem:[%s1 + $0x8] sm:$0xff]
    %vm113 = vcmask 130048
    %v115 = vsel %vm113, %v109, 0
    %v118 = vsel %vm113, %v110, 0
    %120 = vmatpush.msra.mxu0 0.0
    %121 = vmatpush.msra.mxu0 0.0
    %122 = vmatpush.msra.mxu0 0.0
    %123 = vmatpush.msra.mxu0 0.0
    %124 = vmatpush.msra.mxu0 0.0
    %125 = vmatpush.msra.mxu0 0.0
    %126 = vmatpush.msra.mxu0 0.0
    %127 = vmatpush.msra.mxu0 0.0
    %128 = vmatpush.msra.mxu0 0.0
    %129 = vmatpush.msra.mxu0 0.0
    %130 = vmatpush.msra.mxu0 0.0
    %131 = vmatpush.msra.mxu0 0.0
    %132 = vmatpush.msra.mxu0 0.0
    %133 = vmatpush.msra.mxu0 0.0
    %134 = vmatpush.msra.mxu0 %v112
    %135 = vmatpush.msra.mxu0 %v111
    %136 = vmatmul.f32.gmra.mxu0 %v115
    %v137 = vpop.f32.mrf.mxu0
    %v138 = vadd.f32 0.0, %v137
    %139 = vmatmul.f32.gmra.mxu0 %v118
    %v140 = vpop.f32.mrf.mxu0
    %v141 = vadd.f32 0.0, %v140
    %142 = vdwg.mxu0
    %v143 = vld [vmem:[%s2] sm:$0xff]
    %v144 = vld [vmem:[%s2 + $0x8] sm:$0xff]
    %v145 = vld [vmem:[%s2 + $0x10] sm:$0xff]
    %v146 = vld [vmem:[%s2 + $0x18] sm:$0xff]
    %v147 = vld [vmem:[%s3] sm:$0x1]
    %v149 = vperm.slane %v147, 0
    %vm151 = vcmask 261120
    %v153 = vsel %vm151, %v138, 0
    %v156 = vsel %vm151, %v141, 0
    %v159 = vsel %vm151, %v143, 0
    %v162 = vsel %vm151, %v144, 0
    %v165 = vsel %vm151, %v145, 0
    %v168 = vsel %vm151, %v146, 0
    %170 = vmatpush.xpose.msra.mxu0 0.0
    %171 = vmatpush.xpose.msra.mxu0 0.0
    %172 = vmatpush.xpose.msra.mxu0 0.0
    %173 = vmatpush.xpose.msra.mxu0 0.0
    %174 = vmatpush.xpose.msra.mxu0 0.0
    %175 = vmatpush.xpose.msra.mxu0 0.0
    %176 = vmatpush.xpose.msra.mxu0 0.0
    %177 = vmatpush.xpose.msra.mxu0 0.0
    %178 = vmatpush.xpose.msra.mxu0 0.0
    %179 = vmatpush.xpose.msra.mxu0 0.0
    %180 = vmatpush.xpose.msra.mxu0 0.0
    %181 = vmatpush.xpose.msra.mxu0 0.0
    %182 = vmatpush.xpose.msra.mxu0 %v168
    %183 = vmatpush.xpose.msra.mxu0 %v165
    %184 = vmatpush.xpose.msra.mxu0 %v162
    %185 = vmatpush.xpose.msra.mxu0 %v159
    %186 = vmatmul.f32.gmra.mxu0 %v153
    %v187 = vpop.f32.mrf.mxu0
    %v188 = vadd.f32 %v149, %v187
    %189 = vmatmul.f32.gmra.mxu0 %v156
    %v190 = vpop.f32.mrf.mxu0
    %v191 = vadd.f32 %v149, %v190
    %192 = vdwg.mxu0
    %v193 = vmax.f32 %v188, 0.0
    %v194 = vmax.f32 %v191, 0.0
    %195 = vmatpush.msra.mxu0 0.0
    %196 = vmatpush.msra.mxu0 0.0
    %197 = vmatpush.msra.mxu0 0.0
    %198 = vmatpush.msra.mxu0 0.0
    %199 = vmatpush.msra.mxu0 0.0
    %200 = vmatpush.msra.mxu0 0.0
    %201 = vmatpush.msra.mxu0 0.0
    %202 = vmatpush.msra.mxu0 0.0
    %203 = vmatpush.msra.mxu0 0.0
    %204 = vmatpush.msra.mxu0 0.0
    %205 = vmatpush.msra.mxu0 0.0
    %206 = vmatpush.msra.mxu0 0.0
    %207 = vmatpush.msra.mxu0 0.0
    %208 = vmatpush.msra.mxu0 0.0
    %209 = vmatpush.msra.mxu0 %v194
    %210 = vmatpush.msra.mxu0 %v193
    %211 = vmatmul.f32.gmra.mxu0 %v115
    %v212 = vpop.f32.mrf.mxu0
    %v213 = vadd.f32 0.0, %v212
    %214 = vmatmul.f32.gmra.mxu0 %v118
    %v215 = vpop.f32.mrf.mxu0
    %v216 = vadd.f32 0.0, %v215
    %217 = vdwg.mxu0
    %v218 = vld [vmem:[%s4] sm:$0xff]
    %v219 = vld [vmem:[%s4 + $0x8] sm:$0xff]
    %v220 = vld [vmem:[%s4 + $0x10] sm:$0xff]
    %v221 = vld [vmem:[%s4 + $0x18] sm:$0xff]
    %v222 = vld [vmem:[%s5] sm:$0x1]
    %v224 = vperm.slane %v222, 0
    %v227 = vsel %vm151, %v213, 0
    %v230 = vsel %vm151, %v216, 0
    %v233 = vsel %vm151, %v218, 0
    %v236 = vsel %vm151, %v219, 0
    %v239 = vsel %vm151, %v220, 0
    %v242 = vsel %vm151, %v221, 0
    %244 = vmatpush.xpose.msra.mxu0 0.0
    %245 = vmatpush.xpose.msra.mxu0 0.0
    %246 = vmatpush.xpose.msra.mxu0 0.0
    %247 = vmatpush.xpose.msra.mxu0 0.0
    %248 = vmatpush.xpose.msra.mxu0 0.0
    %249 = vmatpush.xpose.msra.mxu0 0.0
    %250 = vmatpush.xpose.msra.mxu0 0.0
    %251 = vmatpush.xpose.msra.mxu0 0.0
    %252 = vmatpush.xpose.msra.mxu0 0.0
    %253 = vmatpush.xpose.msra.mxu0 0.0
    %254 = vmatpush.xpose.msra.mxu0 0.0
    %255 = vmatpush.xpose.msra.mxu0 0.0
    %256 = vmatpush.xpose.msra.mxu0 %v242
    %257 = vmatpush.xpose.msra.mxu0 %v239
    %258 = vmatpush.xpose.msra.mxu0 %v236
    %259 = vmatpush.xpose.msra.mxu0 %v233
    %260 = vmatmul.f32.gmra.mxu0 %v227
    %v261 = vpop.f32.mrf.mxu0
    %v262 = vadd.f32 %v224, %v261
    %263 = vmatmul.f32.gmra.mxu0 %v230
    %v264 = vpop.f32.mrf.mxu0
    %v265 = vadd.f32 %v224, %v264
    %266 = vdwg.mxu0
    %v267 = vadd.f32 %v262, %v111
    %v268 = vadd.f32 %v265, %v112
    %v269 = vld [vmem:[%s6] sm:$0xff]
    %v270 = vld [vmem:[%s6 + $0x8] sm:$0xff]
    %v271 = vld [vmem:[%s6 + $0x10] sm:$0xff]
    %v272 = vld [vmem:[%s6 + $0x18] sm:$0xff]
    %277 = vrot.lane.b32.xlu0 %v269, 127
    %v278 = vpop.permute.xlu0 %277
    %279 = vrot.lane.b32.xlu0 %v270, 127
    %v280 = vpop.permute.xlu0 %279
    %281 = vrot.lane.b32.xlu0 %v271, 127
    %v282 = vpop.permute.xlu0 %281
    %283 = vrot.lane.b32.xlu0 %v272, 127
    %v284 = vpop.permute.xlu0 %283
    %289 = vrot.lane.b32.xlu0 %v269, 126
    %v290 = vpop.permute.xlu0 %289
    %291 = vrot.lane.b32.xlu0 %v270, 126
    %v292 = vpop.permute.xlu0 %291
    %293 = vrot.lane.b32.xlu0 %v271, 126
    %v294 = vpop.permute.xlu0 %293
    %295 = vrot.lane.b32.xlu0 %v272, 126
    %v296 = vpop.permute.xlu0 %295
    %302 = vset.pattern.permute.xlu0 0
    %303 = vperm.xlu0 %302, %v73
    %v304 = vpop.permute.xlu0 %303
    %307 = vset.pattern.permute.xlu0 0
    %308 = vperm.xlu0 %307, %v74
    %v309 = vpop.permute.xlu0 %308
    %312 = vset.pattern.permute.xlu0 0
    %313 = vperm.xlu0 %312, %v75
    %v314 = vpop.permute.xlu0 %313
    %317 = vset.pattern.permute.xlu0 0
    %318 = vperm.xlu0 %317, %v76
    %v319 = vpop.permute.xlu0 %318
    %vm321 = vcmask 785408
    %v323 = vsel %vm321, %v69, 0
    %v326 = vsel %vm321, %v70, 0
    %v329 = vsel %vm321, %v71, 0
    %v332 = vsel %vm321, %v72, 0
    %334 = vmatpush.msra.mxu0 0.0
    %335 = vmatpush.msra.mxu0 0.0
    %336 = vmatpush.msra.mxu0 0.0
    %337 = vmatpush.msra.mxu0 0.0
    %338 = vmatpush.msra.mxu0 %v296
    %339 = vmatpush.msra.mxu0 %v294
    %340 = vmatpush.msra.mxu0 %v292
    %341 = vmatpush.msra.mxu0 %v290
    %342 = vmatpush.msra.mxu0 %v284
    %343 = vmatpush.msra.mxu0 %v282
    %344 = vmatpush.msra.mxu0 %v280
    %345 = vmatpush.msra.mxu0 %v278
    %346 = vmatpush.msra.mxu0 %v272
    %347 = vmatpush.msra.mxu0 %v271
    %348 = vmatpush.msra.mxu0 %v270
    %349 = vmatpush.msra.mxu0 %v269
    %350 = vmatmul.f32.gmra.mxu0 %v323
    %v351 = vpop.f32.mrf.mxu0
    %v352 = vadd.f32 %v304, %v351
    %353 = vmatmul.f32.gmra.mxu0 %v326
    %v354 = vpop.f32.mrf.mxu0
    %v355 = vadd.f32 %v309, %v354
    %356 = vmatmul.f32.gmra.mxu0 %v329
    %v357 = vpop.f32.mrf.mxu0
    %v358 = vadd.f32 %v314, %v357
    %359 = vmatmul.f32.gmra.mxu0 %v332
    %v360 = vpop.f32.mrf.mxu0
    %v361 = vadd.f32 %v319, %v360
    %362 = vdwg.mxu0
    %vm363 = vcmp.gt.f32.partialorder %v352, 0.0
    %vm364 = vcmp.gt.f32.partialorder %v355, 0.0
    %vm365 = vcmp.gt.f32.partialorder %v358, 0.0
    %vm366 = vcmp.gt.f32.partialorder %v361, 0.0
    %v367 = vmul.f32 %v352, 1.442695
    %v368 = vpow.pop %v367
    %v369 = vmul.f32 %v355, 1.442695
    %v370 = vpow.pop %v369
    %v371 = vmul.f32 %v358, 1.442695
    %v372 = vpow.pop %v371
    %v373 = vmul.f32 %v361, 1.442695
    %v374 = vpow.pop %v373
    %v375 = vsub.f32 %v368, 1.0
    %v376 = vsub.f32 %v370, 1.0
    %v377 = vsub.f32 %v372, 1.0
    %v378 = vsub.f32 %v374, 1.0
    %v379 = vmul.f32 %v375, 1.6732632
    %v380 = vmul.f32 %v376, 1.6732632
    %v381 = vmul.f32 %v377, 1.6732632
    %v382 = vmul.f32 %v378, 1.6732632
    %v383 = vsel %vm363, %v352, %v379
    %v384 = vsel %vm364, %v355, %v380
    %v385 = vsel %vm365, %v358, %v381
    %v386 = vsel %vm366, %v361, %v382
    %v387 = vmul.f32 %v383, 1.050701
    %v388 = vmul.f32 %v384, 1.050701
    %v389 = vmul.f32 %v385, 1.050701
    %v390 = vmul.f32 %v386, 1.050701
    %395 = vrot.lane.b32.xlu0 %v387, 126
    %v396 = vpop.permute.xlu0 %395
    %397 = vrot.lane.b32.xlu0 %v388, 126
    %v398 = vpop.permute.xlu0 %397
    %399 = vrot.lane.b32.xlu0 %v389, 126
    %v400 = vpop.permute.xlu0 %399
    %401 = vrot.lane.b32.xlu0 %v390, 126
    %v402 = vpop.permute.xlu0 %401
    %407 = vrot.lane.b32.xlu0 %v387, 124
    %v408 = vpop.permute.xlu0 %407
    %409 = vrot.lane.b32.xlu0 %v388, 124
    %v410 = vpop.permute.xlu0 %409
    %411 = vrot.lane.b32.xlu0 %v389, 124
    %v412 = vpop.permute.xlu0 %411
    %413 = vrot.lane.b32.xlu0 %v390, 124
    %v414 = vpop.permute.xlu0 %413
    %420 = vset.pattern.permute.xlu0 0
    %421 = vperm.xlu0 %420, %v81
    %v422 = vpop.permute.xlu0 %421
    %425 = vset.pattern.permute.xlu0 0
    %426 = vperm.xlu0 %425, %v82
    %v427 = vpop.permute.xlu0 %426
    %430 = vset.pattern.permute.xlu0 0
    %431 = vperm.xlu0 %430, %v83
    %v432 = vpop.permute.xlu0 %431
    %435 = vset.pattern.permute.xlu0 0
    %436 = vperm.xlu0 %435, %v84
    %v437 = vpop.permute.xlu0 %436
    %v440 = vsel %vm321, %v77, 0
    %v443 = vsel %vm321, %v78, 0
    %v446 = vsel %vm321, %v79, 0
    %v449 = vsel %vm321, %v80, 0
    %451 = vmatpush.msra.mxu0 0.0
    %452 = vmatpush.msra.mxu0 0.0
    %453 = vmatpush.msra.mxu0 0.0
    %454 = vmatpush.msra.mxu0 0.0
    %455 = vmatpush.msra.mxu0 %v414
    %456 = vmatpush.msra.mxu0 %v412
    %457 = vmatpush.msra.mxu0 %v410
    %458 = vmatpush.msra.mxu0 %v408
    %459 = vmatpush.msra.mxu0 %v402
    %460 = vmatpush.msra.mxu0 %v400
    %461 = vmatpush.msra.mxu0 %v398
    %462 = vmatpush.msra.mxu0 %v396
    %463 = vmatpush.msra.mxu0 %v390
    %464 = vmatpush.msra.mxu0 %v389
    %465 = vmatpush.msra.mxu0 %v388
    %466 = vmatpush.msra.mxu0 %v387
    %467 = vmatmul.f32.gmra.mxu0 %v440
    %v468 = vpop.f32.mrf.mxu0
    %v469 = vadd.f32 %v422, %v468
    %470 = vmatmul.f32.gmra.mxu0 %v443
    %v471 = vpop.f32.mrf.mxu0
    %v472 = vadd.f32 %v427, %v471
    %473 = vmatmul.f32.gmra.mxu0 %v446
    %v474 = vpop.f32.mrf.mxu0
    %v475 = vadd.f32 %v432, %v474
    %476 = vmatmul.f32.gmra.mxu0 %v449
    %v477 = vpop.f32.mrf.mxu0
    %v478 = vadd.f32 %v437, %v477
    %479 = vdwg.mxu0
    %vm480 = vcmp.gt.f32.partialorder %v469, 0.0
    %vm481 = vcmp.gt.f32.partialorder %v472, 0.0
    %vm482 = vcmp.gt.f32.partialorder %v475, 0.0
    %vm483 = vcmp.gt.f32.partialorder %v478, 0.0
    %v484 = vmul.f32 %v469, 1.442695
    %v485 = vpow.pop %v484
    %v486 = vmul.f32 %v472, 1.442695
    %v487 = vpow.pop %v486
    %v488 = vmul.f32 %v475, 1.442695
    %v489 = vpow.pop %v488
    %v490 = vmul.f32 %v478, 1.442695
    %v491 = vpow.pop %v490
    %v492 = vsub.f32 %v485, 1.0
    %v493 = vsub.f32 %v487, 1.0
    %v494 = vsub.f32 %v489, 1.0
    %v495 = vsub.f32 %v491, 1.0
    %v496 = vmul.f32 %v492, 1.6732632
    %v497 = vmul.f32 %v493, 1.6732632
    %v498 = vmul.f32 %v494, 1.6732632
    %v499 = vmul.f32 %v495, 1.6732632
    %v500 = vsel %vm480, %v469, %v496
    %v501 = vsel %vm481, %v472, %v497
    %v502 = vsel %vm482, %v475, %v498
    %v503 = vsel %vm483, %v478, %v499
    %v504 = vmul.f32 %v500, 1.050701
    %v505 = vmul.f32 %v501, 1.050701
    %v506 = vmul.f32 %v502, 1.050701
    %v507 = vmul.f32 %v503, 1.050701
    %512 = vrot.lane.b32.xlu0 %v504, 125
    %v513 = vpop.permute.xlu0 %512
    %514 = vrot.lane.b32.xlu0 %v505, 125
    %v515 = vpop.permute.xlu0 %514
    %516 = vrot.lane.b32.xlu0 %v506, 125
    %v517 = vpop.permute.xlu0 %516
    %518 = vrot.lane.b32.xlu0 %v507, 125
    %v519 = vpop.permute.xlu0 %518
    %524 = vrot.lane.b32.xlu0 %v504, 122
    %v525 = vpop.permute.xlu0 %524
    %526 = vrot.lane.b32.xlu0 %v505, 122
    %v527 = vpop.permute.xlu0 %526
    %528 = vrot.lane.b32.xlu0 %v506, 122
    %v529 = vpop.permute.xlu0 %528
    %530 = vrot.lane.b32.xlu0 %v507, 122
    %v531 = vpop.permute.xlu0 %530
    %537 = vset.pattern.permute.xlu0 0
    %538 = vperm.xlu0 %537, %v89
    %v539 = vpop.permute.xlu0 %538
    %542 = vset.pattern.permute.xlu0 0
    %543 = vperm.xlu0 %542, %v90
    %v544 = vpop.permute.xlu0 %543
    %547 = vset.pattern.permute.xlu0 0
    %548 = vperm.xlu0 %547, %v91
    %v549 = vpop.permute.xlu0 %548
    %552 = vset.pattern.permute.xlu0 0
    %553 = vperm.xlu0 %552, %v92
    %v554 = vpop.permute.xlu0 %553
    %v557 = vsel %vm321, %v85, 0
    %v560 = vsel %vm321, %v86, 0
    %v563 = vsel %vm321, %v87, 0
    %v566 = vsel %vm321, %v88, 0
    %568 = vmatpush.msra.mxu0 0.0
    %569 = vmatpush.msra.mxu0 0.0
    %570 = vmatpush.msra.mxu0 0.0
    %571 = vmatpush.msra.mxu0 0.0
    %572 = vmatpush.msra.mxu0 %v531
    %573 = vmatpush.msra.mxu0 %v529
    %574 = vmatpush.msra.mxu0 %v527
    %575 = vmatpush.msra.mxu0 %v525
    %576 = vmatpush.msra.mxu0 %v519
    %577 = vmatpush.msra.mxu0 %v517
    %578 = vmatpush.msra.mxu0 %v515
    %579 = vmatpush.msra.mxu0 %v513
    %580 = vmatpush.msra.mxu0 %v507
    %581 = vmatpush.msra.mxu0 %v506
    %582 = vmatpush.msra.mxu0 %v505
    %583 = vmatpush.msra.mxu0 %v504
    %584 = vmatmul.f32.gmra.mxu0 %v557
    %v585 = vpop.f32.mrf.mxu0
    %v586 = vadd.f32 %v539, %v585
    %587 = vmatmul.f32.gmra.mxu0 %v560
    %v588 = vpop.f32.mrf.mxu0
    %v589 = vadd.f32 %v544, %v588
    %590 = vmatmul.f32.gmra.mxu0 %v563
    %v591 = vpop.f32.mrf.mxu0
    %v592 = vadd.f32 %v549, %v591
    %593 = vmatmul.f32.gmra.mxu0 %v566
    %v594 = vpop.f32.mrf.mxu0
    %v595 = vadd.f32 %v554, %v594
    %596 = vdwg.mxu0
    %vm597 = vcmp.gt.f32.partialorder %v586, 0.0
    %vm598 = vcmp.gt.f32.partialorder %v589, 0.0
    %vm599 = vcmp.gt.f32.partialorder %v592, 0.0
    %vm600 = vcmp.gt.f32.partialorder %v595, 0.0
    %v601 = vmul.f32 %v586, 1.442695
    %v602 = vpow.pop %v601
    %v603 = vmul.f32 %v589, 1.442695
    %v604 = vpow.pop %v603
    %v605 = vmul.f32 %v592, 1.442695
    %v606 = vpow.pop %v605
    %v607 = vmul.f32 %v595, 1.442695
    %v608 = vpow.pop %v607
    %v609 = vsub.f32 %v602, 1.0
    %v610 = vsub.f32 %v604, 1.0
    %v611 = vsub.f32 %v606, 1.0
    %v612 = vsub.f32 %v608, 1.0
    %v613 = vmul.f32 %v609, 1.6732632
    %v614 = vmul.f32 %v610, 1.6732632
    %v615 = vmul.f32 %v611, 1.6732632
    %v616 = vmul.f32 %v612, 1.6732632
    %v617 = vsel %vm597, %v586, %v613
    %v618 = vsel %vm598, %v589, %v614
    %v619 = vsel %vm599, %v592, %v615
    %v620 = vsel %vm600, %v595, %v616
    %v621 = vmul.f32 %v617, 1.050701
    %v622 = vmul.f32 %v618, 1.050701
    %v623 = vmul.f32 %v619, 1.050701
    %v624 = vmul.f32 %v620, 1.050701
    %625 = vxpose.xlu0.b32.start [1/16] %v621, 128
    %626 = vxpose.xlu0.b32.cont [2/16] %v622, 128
    %627 = vxpose.xlu0.b32.cont [3/16] %v623, 128
    %628 = vxpose.xlu0.b32.cont [4/16] %v624, 128
    %629 = vxpose.xlu0.b32.cont [5/16] 0.0, 128
    %630 = vxpose.xlu0.b32.cont [6/16] 0.0, 128
    %631 = vxpose.xlu0.b32.cont [7/16] 0.0, 128
    %632 = vxpose.xlu0.b32.cont [8/16] 0.0, 128
    %633 = vxpose.xlu0.b32.cont [9/16] 0.0, 128
    %634 = vxpose.xlu0.b32.cont [10/16] 0.0, 128
    %635 = vxpose.xlu0.b32.cont [11/16] 0.0, 128
    %636 = vxpose.xlu0.b32.cont [12/16] 0.0, 128
    %637 = vxpose.xlu0.b32.cont [13/16] 0.0, 128
    %638 = vxpose.xlu0.b32.cont [14/16] 0.0, 128
    %639 = vxpose.xlu0.b32.cont [15/16] 0.0, 128
    %640 = vxpose.xlu0.b32.end [16/16] 0.0, 128
    %v641 = vpop.trf.xlu0
    %v642 = vpop.trf.xlu0
    %v643 = vpop.trf.xlu0
    %v644 = vpop.trf.xlu0
    %v645 = vpop.trf.xlu0
    %v646 = vpop.trf.xlu0
    %v647 = vpop.trf.xlu0
    %v648 = vpop.trf.xlu0
    %v649 = vpop.trf.xlu0
    %v650 = vpop.trf.xlu0
    %v651 = vpop.trf.xlu0
    %v652 = vpop.trf.xlu0
    %v653 = vpop.trf.xlu0
    %v654 = vpop.trf.xlu0
    %v655 = vpop.trf.xlu0
    %v656 = vpop.trf.xlu0
    %v658 = vsel %vm151, %v641, 0
    %v661 = vsel %vm151, %v642, 0
    %v664 = vsel %vm151, %v643, 0
    %v667 = vsel %vm151, %v267, 0
    %v670 = vsel %vm151, %v268, 0
    %672 = vmatpush.xpose.msra.mxu0 0.0
    %673 = vmatpush.xpose.msra.mxu0 0.0
    %674 = vmatpush.xpose.msra.mxu0 0.0
    %675 = vmatpush.xpose.msra.mxu0 0.0
    %676 = vmatpush.xpose.msra.mxu0 0.0
    %677 = vmatpush.xpose.msra.mxu0 0.0
    %678 = vmatpush.xpose.msra.mxu0 0.0
    %679 = vmatpush.xpose.msra.mxu0 0.0
    %680 = vmatpush.xpose.msra.mxu0 0.0
    %681 = vmatpush.xpose.msra.mxu0 0.0
    %682 = vmatpush.xpose.msra.mxu0 0.0
    %683 = vmatpush.xpose.msra.mxu0 0.0
    %684 = vmatpush.xpose.msra.mxu0 0.0
    %685 = vmatpush.xpose.msra.mxu0 0.0
    %686 = vmatpush.xpose.msra.mxu0 %v670
    %687 = vmatpush.xpose.msra.mxu0 %v667
    %688 = vmatmul.f32.gmra.mxu0 %v658
    %v689 = vpop.f32.mrf.mxu0
    %v690 = vadd.f32 0.0, %v689
    %691 = vmatmul.f32.gmra.mxu0 %v661
    %v692 = vpop.f32.mrf.mxu0
    %v693 = vadd.f32 0.0, %v692
    %694 = vmatmul.f32.gmra.mxu0 %v664
    %v695 = vpop.f32.mrf.mxu0
    %v696 = vadd.f32 0.0, %v695
    %697 = vdwg.mxu0
    %v698 = vsel %vm113, %v690, -inf
    %v699 = vsel %vm113, %v693, -inf
    %vm700 = vcmask 125952
    %v701 = vsel %vm700, %v696, -inf
    %v702 = vmax.f32 %v698, %v699
    %v703 = vmax.f32 %v702, %v701
    %v704 = vrot.slane %v703, 4
    %v705 = vmax.f32 %v703, %v704
    %v706 = vrot.slane %v705, 2
    %v707 = vmax.f32 %v705, %v706
    %v708 = vrot.slane %v707, 1
    %v709 = vmax.f32 %v707, %v708
    %v710 = vsub.f32 %v690, %v709
    %v711 = vsub.f32 %v693, %v709
    %v712 = vsub.f32 %v696, %v709
    %v713 = vmul.f32 %v710, 1.442695
    %v714 = vpow.pop %v713
    %v715 = vmul.f32 %v711, 1.442695
    %v716 = vpow.pop %v715
    %v717 = vmul.f32 %v712, 1.442695
    %v718 = vpow.pop %v717
    %v719 = vsel %vm113, %v714, 0.0
    %v720 = vsel %vm113, %v716, 0.0
    %v721 = vadd.f32 %v719, %v720
    %v722 = vsel %vm700, %v718, 0.0
    %v723 = vadd.f32 %v721, %v722
    %v724 = vrot.slane %v723, 4
    %v725 = vadd.f32 %v723, %v724
    %v726 = vrot.slane %v725, 2
    %v727 = vadd.f32 %v725, %v726
    %v728 = vrot.slane %v727, 1
    %v729 = vadd.f32 %v727, %v728
    %v730 = vmul.f32 %v714, %v690
    %v731 = vmul.f32 %v716, %v693
    %v732 = vmul.f32 %v718, %v696
    %v733 = vsel %vm113, %v730, 0.0
    %v734 = vsel %vm113, %v731, 0.0
    %v735 = vadd.f32 %v733, %v734
    %v736 = vsel %vm700, %v732, 0.0
    %v737 = vadd.f32 %v735, %v736
    %v738 = vrot.slane %v737, 4
    %v739 = vadd.f32 %v737, %v738
    %v740 = vrot.slane %v739, 2
    %v741 = vadd.f32 %v739, %v740
    %v742 = vrot.slane %v741, 1
    %v743 = vadd.f32 %v741, %v742
    %v744 = vrcp.pop %v729
    %v745 = vmul.f32 %v729, %v744
    %v746 = vsub.f32 1.0, %v745
    %v747 = vmul.f32 %v744, %v746
    %v748 = vadd.f32 %v744, %v747
    %vm749 = vweird.f32 %v729
    %vm750 = vweird.f32 %v744
    %vm751 = vmor %vm749, %vm750
    %v752 = vsel %vm751, %v744, %v748
    %v753 = vand.u32 2147483647, %v729
    %vm754 = vcmp.eq.f32.partialorder %v753, 8.507059e+37
    %v755 = vand.u32 %v729, 2147483648
    %v756 = vor.u32 1.1754944e-38, %v755
    %v757 = vsel %vm754, %v756, %v752
    %v758 = vmul.f32 %v743, %v757
    %s759 = scalar_lea.vmem %s6, 64
    %v760 = vld [vmem:[%s759] sm:$0xff]
    %v761 = vld [vmem:[%s759 + $0x8] sm:$0xff]
    %v762 = vld [vmem:[%s759 + $0x10] sm:$0xff]
    %v763 = vld [vmem:[%s759 + $0x18] sm:$0xff]
    %768 = vrot.lane.b32.xlu0 %v760, 127
    %v769 = vpop.permute.xlu0 %768
    %770 = vrot.lane.b32.xlu0 %v761, 127
    %v771 = vpop.permute.xlu0 %770
    %772 = vrot.lane.b32.xlu0 %v762, 127
    %v773 = vpop.permute.xlu0 %772
    %774 = vrot.lane.b32.xlu0 %v763, 127
    %v775 = vpop.permute.xlu0 %774
    %780 = vrot.lane.b32.xlu0 %v760, 126
    %v781 = vpop.permute.xlu0 %780
    %782 = vrot.lane.b32.xlu0 %v761, 126
    %v783 = vpop.permute.xlu0 %782
    %784 = vrot.lane.b32.xlu0 %v762, 126
    %v785 = vpop.permute.xlu0 %784
    %786 = vrot.lane.b32.xlu0 %v763, 126
    %v787 = vpop.permute.xlu0 %786
    %792 = vmatpush.msra.mxu0 0.0
    %793 = vmatpush.msra.mxu0 0.0
    %794 = vmatpush.msra.mxu0 0.0
    %795 = vmatpush.msra.mxu0 0.0
    %796 = vmatpush.msra.mxu0 %v787
    %797 = vmatpush.msra.mxu0 %v785
    %798 = vmatpush.msra.mxu0 %v783
    %799 = vmatpush.msra.mxu0 %v781
    %800 = vmatpush.msra.mxu0 %v775
    %801 = vmatpush.msra.mxu0 %v773
    %802 = vmatpush.msra.mxu0 %v771
    %803 = vmatpush.msra.mxu0 %v769
    %804 = vmatpush.msra.mxu0 %v763
    %805 = vmatpush.msra.mxu0 %v762
    %806 = vmatpush.msra.mxu0 %v761
    %807 = vmatpush.msra.mxu0 %v760
    %808 = vmatmul.f32.gmra.mxu0 %v323
    %v809 = vpop.f32.mrf.mxu0
    %v810 = vadd.f32 %v304, %v809
    %811 = vmatmul.f32.gmra.mxu0 %v326
    %v812 = vpop.f32.mrf.mxu0
    %v813 = vadd.f32 %v309, %v812
    %814 = vmatmul.f32.gmra.mxu0 %v329
    %v815 = vpop.f32.mrf.mxu0
    %v816 = vadd.f32 %v314, %v815
    %817 = vmatmul.f32.gmra.mxu0 %v332
    %v818 = vpop.f32.mrf.mxu0
    %v819 = vadd.f32 %v319, %v818
    %820 = vdwg.mxu0
    %vm821 = vcmp.gt.f32.partialorder %v810, 0.0
    %vm822 = vcmp.gt.f32.partialorder %v813, 0.0
    %vm823 = vcmp.gt.f32.partialorder %v816, 0.0
    %vm824 = vcmp.gt.f32.partialorder %v819, 0.0
    %v825 = vmul.f32 %v810, 1.442695
    %v826 = vpow.pop %v825
    %v827 = vmul.f32 %v813, 1.442695
    %v828 = vpow.pop %v827
    %v829 = vmul.f32 %v816, 1.442695
    %v830 = vpow.pop %v829
    %v831 = vmul.f32 %v819, 1.442695
    %v832 = vpow.pop %v831
    %v833 = vsub.f32 %v826, 1.0
    %v834 = vsub.f32 %v828, 1.0
    %v835 = vsub.f32 %v830, 1.0
    %v836 = vsub.f32 %v832, 1.0
    %v837 = vmul.f32 %v833, 1.6732632
    %v838 = vmul.f32 %v834, 1.6732632
    %v839 = vmul.f32 %v835, 1.6732632
    %v840 = vmul.f32 %v836, 1.6732632
    %v841 = vsel %vm821, %v810, %v837
    %v842 = vsel %vm822, %v813, %v838
    %v843 = vsel %vm823, %v816, %v839
    %v844 = vsel %vm824, %v819, %v840
    %v845 = vmul.f32 %v841, 1.050701
    %v846 = vmul.f32 %v842, 1.050701
    %v847 = vmul.f32 %v843, 1.050701
    %v848 = vmul.f32 %v844, 1.050701
    %853 = vrot.lane.b32.xlu0 %v845, 126
    %v854 = vpop.permute.xlu0 %853
    %855 = vrot.lane.b32.xlu0 %v846, 126
    %v856 = vpop.permute.xlu0 %855
    %857 = vrot.lane.b32.xlu0 %v847, 126
    %v858 = vpop.permute.xlu0 %857
    %859 = vrot.lane.b32.xlu0 %v848, 126
    %v860 = vpop.permute.xlu0 %859
    %865 = vrot.lane.b32.xlu0 %v845, 124
    %v866 = vpop.permute.xlu0 %865
    %867 = vrot.lane.b32.xlu0 %v846, 124
    %v868 = vpop.permute.xlu0 %867
    %869 = vrot.lane.b32.xlu0 %v847, 124
    %v870 = vpop.permute.xlu0 %869
    %871 = vrot.lane.b32.xlu0 %v848, 124
    %v872 = vpop.permute.xlu0 %871
    %877 = vmatpush.msra.mxu0 0.0
    %878 = vmatpush.msra.mxu0 0.0
    %879 = vmatpush.msra.mxu0 0.0
    %880 = vmatpush.msra.mxu0 0.0
    %881 = vmatpush.msra.mxu0 %v872
    %882 = vmatpush.msra.mxu0 %v870
    %883 = vmatpush.msra.mxu0 %v868
    %884 = vmatpush.msra.mxu0 %v866
    %885 = vmatpush.msra.mxu0 %v860
    %886 = vmatpush.msra.mxu0 %v858
    %887 = vmatpush.msra.mxu0 %v856
    %888 = vmatpush.msra.mxu0 %v854
    %889 = vmatpush.msra.mxu0 %v848
    %890 = vmatpush.msra.mxu0 %v847
    %891 = vmatpush.msra.mxu0 %v846
    %892 = vmatpush.msra.mxu0 %v845
    %893 = vmatmul.f32.gmra.mxu0 %v440
    %v894 = vpop.f32.mrf.mxu0
    %v895 = vadd.f32 %v422, %v894
    %896 = vmatmul.f32.gmra.mxu0 %v443
    %v897 = vpop.f32.mrf.mxu0
    %v898 = vadd.f32 %v427, %v897
    %899 = vmatmul.f32.gmra.mxu0 %v446
    %v900 = vpop.f32.mrf.mxu0
    %v901 = vadd.f32 %v432, %v900
    %902 = vmatmul.f32.gmra.mxu0 %v449
    %v903 = vpop.f32.mrf.mxu0
    %v904 = vadd.f32 %v437, %v903
    %905 = vdwg.mxu0
    %vm906 = vcmp.gt.f32.partialorder %v895, 0.0
    %vm907 = vcmp.gt.f32.partialorder %v898, 0.0
    %vm908 = vcmp.gt.f32.partialorder %v901, 0.0
    %vm909 = vcmp.gt.f32.partialorder %v904, 0.0
    %v910 = vmul.f32 %v895, 1.442695
    %v911 = vpow.pop %v910
    %v912 = vmul.f32 %v898, 1.442695
    %v913 = vpow.pop %v912
    %v914 = vmul.f32 %v901, 1.442695
    %v915 = vpow.pop %v914
    %v916 = vmul.f32 %v904, 1.442695
    %v917 = vpow.pop %v916
    %v918 = vsub.f32 %v911, 1.0
    %v919 = vsub.f32 %v913, 1.0
    %v920 = vsub.f32 %v915, 1.0
    %v921 = vsub.f32 %v917, 1.0
    %v922 = vmul.f32 %v918, 1.6732632
    %v923 = vmul.f32 %v919, 1.6732632
    %v924 = vmul.f32 %v920, 1.6732632
    %v925 = vmul.f32 %v921, 1.6732632
    %v926 = vsel %vm906, %v895, %v922
    %v927 = vsel %vm907, %v898, %v923
    %v928 = vsel %vm908, %v901, %v924
    %v929 = vsel %vm909, %v904, %v925
    %v930 = vmul.f32 %v926, 1.050701
    %v931 = vmul.f32 %v927, 1.050701
    %v932 = vmul.f32 %v928, 1.050701
    %v933 = vmul.f32 %v929, 1.050701
    %938 = vrot.lane.b32.xlu0 %v930, 125
    %v939 = vpop.permute.xlu0 %938
    %940 = vrot.lane.b32.xlu0 %v931, 125
    %v941 = vpop.permute.xlu0 %940
    %942 = vrot.lane.b32.xlu0 %v932, 125
    %v943 = vpop.permute.xlu0 %942
    %944 = vrot.lane.b32.xlu0 %v933, 125
    %v945 = vpop.permute.xlu0 %944
    %950 = vrot.lane.b32.xlu0 %v930, 122
    %v951 = vpop.permute.xlu0 %950
    %952 = vrot.lane.b32.xlu0 %v931, 122
    %v953 = vpop.permute.xlu0 %952
    %954 = vrot.lane.b32.xlu0 %v932, 122
    %v955 = vpop.permute.xlu0 %954
    %956 = vrot.lane.b32.xlu0 %v933, 122
    %v957 = vpop.permute.xlu0 %956
    %962 = vmatpush.msra.mxu0 0.0
    %963 = vmatpush.msra.mxu0 0.0
    %964 = vmatpush.msra.mxu0 0.0
    %965 = vmatpush.msra.mxu0 0.0
    %966 = vmatpush.msra.mxu0 %v957
    %967 = vmatpush.msra.mxu0 %v955
    %968 = vmatpush.msra.mxu0 %v953
    %969 = vmatpush.msra.mxu0 %v951
    %970 = vmatpush.msra.mxu0 %v945
    %971 = vmatpush.msra.mxu0 %v943
    %972 = vmatpush.msra.mxu0 %v941
    %973 = vmatpush.msra.mxu0 %v939
    %974 = vmatpush.msra.mxu0 %v933
    %975 = vmatpush.msra.mxu0 %v932
    %976 = vmatpush.msra.mxu0 %v931
    %977 = vmatpush.msra.mxu0 %v930
    %978 = vmatmul.f32.gmra.mxu0 %v557
    %v979 = vpop.f32.mrf.mxu0
    %v980 = vadd.f32 %v539, %v979
    %981 = vmatmul.f32.gmra.mxu0 %v560
    %v982 = vpop.f32.mrf.mxu0
    %v983 = vadd.f32 %v544, %v982
    %984 = vmatmul.f32.gmra.mxu0 %v563
    %v985 = vpop.f32.mrf.mxu0
    %v986 = vadd.f32 %v549, %v985
    %987 = vmatmul.f32.gmra.mxu0 %v566
    %v988 = vpop.f32.mrf.mxu0
    %v989 = vadd.f32 %v554, %v988
    %990 = vdwg.mxu0
    %vm991 = vcmp.gt.f32.partialorder %v980, 0.0
    %vm992 = vcmp.gt.f32.partialorder %v983, 0.0
    %vm993 = vcmp.gt.f32.partialorder %v986, 0.0
    %vm994 = vcmp.gt.f32.partialorder %v989, 0.0
    %v995 = vmul.f32 %v980, 1.442695
    %v996 = vpow.pop %v995
    %v997 = vmul.f32 %v983, 1.442695
    %v998 = vpow.pop %v997
    %v999 = vmul.f32 %v986, 1.442695
    %v1000 = vpow.pop %v999
    %v1001 = vmul.f32 %v989, 1.442695
    %v1002 = vpow.pop %v1001
    %v1003 = vsub.f32 %v996, 1.0
    %v1004 = vsub.f32 %v998, 1.0
    %v1005 = vsub.f32 %v1000, 1.0
    %v1006 = vsub.f32 %v1002, 1.0
    %v1007 = vmul.f32 %v1003, 1.6732632
    %v1008 = vmul.f32 %v1004, 1.6732632
    %v1009 = vmul.f32 %v1005, 1.6732632
    %v1010 = vmul.f32 %v1006, 1.6732632
    %v1011 = vsel %vm991, %v980, %v1007
    %v1012 = vsel %vm992, %v983, %v1008
    %v1013 = vsel %vm993, %v986, %v1009
    %v1014 = vsel %vm994, %v989, %v1010
    %v1015 = vmul.f32 %v1011, 1.050701
    %v1016 = vmul.f32 %v1012, 1.050701
    %v1017 = vmul.f32 %v1013, 1.050701
    %v1018 = vmul.f32 %v1014, 1.050701
    %1019 = vxpose.xlu0.b32.start [1/16] %v1015, 128
    %1020 = vxpose.xlu0.b32.cont [2/16] %v1016, 128
    %1021 = vxpose.xlu0.b32.cont [3/16] %v1017, 128
    %1022 = vxpose.xlu0.b32.cont [4/16] %v1018, 128
    %1023 = vxpose.xlu0.b32.cont [5/16] 0.0, 128
    %1024 = vxpose.xlu0.b32.cont [6/16] 0.0, 128
    %1025 = vxpose.xlu0.b32.cont [7/16] 0.0, 128
    %1026 = vxpose.xlu0.b32.cont [8/16] 0.0, 128
    %1027 = vxpose.xlu0.b32.cont [9/16] 0.0, 128
    %1028 = vxpose.xlu0.b32.cont [10/16] 0.0, 128
    %1029 = vxpose.xlu0.b32.cont [11/16] 0.0, 128
    %1030 = vxpose.xlu0.b32.cont [12/16] 0.0, 128
    %1031 = vxpose.xlu0.b32.cont [13/16] 0.0, 128
    %1032 = vxpose.xlu0.b32.cont [14/16] 0.0, 128
    %1033 = vxpose.xlu0.b32.cont [15/16] 0.0, 128
    %1034 = vxpose.xlu0.b32.end [16/16] 0.0, 128
    %v1035 = vpop.trf.xlu0
    %v1036 = vpop.trf.xlu0
    %v1037 = vpop.trf.xlu0
    %v1038 = vpop.trf.xlu0
    %v1039 = vpop.trf.xlu0
    %v1040 = vpop.trf.xlu0
    %v1041 = vpop.trf.xlu0
    %v1042 = vpop.trf.xlu0
    %v1043 = vpop.trf.xlu0
    %v1044 = vpop.trf.xlu0
    %v1045 = vpop.trf.xlu0
    %v1046 = vpop.trf.xlu0
    %v1047 = vpop.trf.xlu0
    %v1048 = vpop.trf.xlu0
    %v1049 = vpop.trf.xlu0
    %v1050 = vpop.trf.xlu0
    %v1052 = vsel %vm151, %v1035, 0
    %v1055 = vsel %vm151, %v1036, 0
    %v1058 = vsel %vm151, %v1037, 0
    %1060 = vmatpush.xpose.msra.mxu0 0.0
    %1061 = vmatpush.xpose.msra.mxu0 0.0
    %1062 = vmatpush.xpose.msra.mxu0 0.0
    %1063 = vmatpush.xpose.msra.mxu0 0.0
    %1064 = vmatpush.xpose.msra.mxu0 0.0
    %1065 = vmatpush.xpose.msra.mxu0 0.0
    %1066 = vmatpush.xpose.msra.mxu0 0.0
    %1067 = vmatpush.xpose.msra.mxu0 0.0
    %1068 = vmatpush.xpose.msra.mxu0 0.0
    %1069 = vmatpush.xpose.msra.mxu0 0.0
    %1070 = vmatpush.xpose.msra.mxu0 0.0
    %1071 = vmatpush.xpose.msra.mxu0 0.0
    %1072 = vmatpush.xpose.msra.mxu0 0.0
    %1073 = vmatpush.xpose.msra.mxu0 0.0
    %1074 = vmatpush.xpose.msra.mxu0 %v670
    %1075 = vmatpush.xpose.msra.mxu0 %v667
    %1076 = vmatmul.f32.gmra.mxu0 %v1052
    %v1077 = vpop.f32.mrf.mxu0
    %v1078 = vadd.f32 0.0, %v1077
    %1079 = vmatmul.f32.gmra.mxu0 %v1055
    %v1080 = vpop.f32.mrf.mxu0
    %v1081 = vadd.f32 0.0, %v1080
    %1082 = vmatmul.f32.gmra.mxu0 %v1058
    %v1083 = vpop.f32.mrf.mxu0
    %v1084 = vadd.f32 0.0, %v1083
    %1085 = vdwg.mxu0
    %v1086 = vsel %vm113, %v1078, -inf
    %v1087 = vsel %vm113, %v1081, -inf
    %v1088 = vsel %vm700, %v1084, -inf
    %v1089 = vmax.f32 %v1086, %v1087
    %v1090 = vmax.f32 %v1089, %v1088
    %v1091 = vrot.slane %v1090, 4
    %v1092 = vmax.f32 %v1090, %v1091
    %v1093 = vrot.slane %v1092, 2
    %v1094 = vmax.f32 %v1092, %v1093
    %v1095 = vrot.slane %v1094, 1
    %v1096 = vmax.f32 %v1094, %v1095
    %v1097 = vsub.f32 %v1078, %v1096
    %v1098 = vsub.f32 %v1081, %v1096
    %v1099 = vsub.f32 %v1084, %v1096
    %v1100 = vmul.f32 %v1097, 1.442695
    %v1101 = vpow.pop %v1100
    %v1102 = vmul.f32 %v1098, 1.442695
    %v1103 = vpow.pop %v1102
    %v1104 = vmul.f32 %v1099, 1.442695
    %v1105 = vpow.pop %v1104
    %v1106 = vsel %vm113, %v1101, 0.0
    %v1107 = vsel %vm113, %v1103, 0.0
    %v1108 = vadd.f32 %v1106, %v1107
    %v1109 = vsel %vm700, %v1105, 0.0
    %v1110 = vadd.f32 %v1108, %v1109
    %v1111 = vrot.slane %v1110, 4
    %v1112 = vadd.f32 %v1110, %v1111
    %v1113 = vrot.slane %v1112, 2
    %v1114 = vadd.f32 %v1112, %v1113
    %v1115 = vrot.slane %v1114, 1
    %v1116 = vadd.f32 %v1114, %v1115
    %v1117 = vmul.f32 %v1101, %v1078
    %v1118 = vmul.f32 %v1103, %v1081
    %v1119 = vmul.f32 %v1105, %v1084
    %v1120 = vsel %vm113, %v1117, 0.0
    %v1121 = vsel %vm113, %v1118, 0.0
    %v1122 = vadd.f32 %v1120, %v1121
    %v1123 = vsel %vm700, %v1119, 0.0
    %v1124 = vadd.f32 %v1122, %v1123
    %v1125 = vrot.slane %v1124, 4
    %v1126 = vadd.f32 %v1124, %v1125
    %v1127 = vrot.slane %v1126, 2
    %v1128 = vadd.f32 %v1126, %v1127
    %v1129 = vrot.slane %v1128, 1
    %v1130 = vadd.f32 %v1128, %v1129
    %v1131 = vrcp.pop %v1116
    %v1132 = vmul.f32 %v1116, %v1131
    %v1133 = vsub.f32 1.0, %v1132
    %v1134 = vmul.f32 %v1131, %v1133
    %v1135 = vadd.f32 %v1131, %v1134
    %vm1136 = vweird.f32 %v1116
    %vm1137 = vweird.f32 %v1131
    %vm1138 = vmor %vm1136, %vm1137
    %v1139 = vsel %vm1138, %v1131, %v1135
    %v1140 = vand.u32 2147483647, %v1116
    %vm1141 = vcmp.eq.f32.partialorder %v1140, 8.507059e+37
    %v1142 = vand.u32 %v1116, 2147483648
    %v1143 = vor.u32 1.1754944e-38, %v1142
    %v1144 = vsel %vm1141, %v1143, %v1139
    %v1145 = vmul.f32 %v1130, %v1144
    %v1146 = vadd.f32 %v758, %v1145
    %v1147 = vsub.f32 0.0, %v1146
    %v1148 = vmul.f32 %v1147, 1.442695
    %v1149 = vpow.pop %v1148
    %v1150 = vadd.f32 %v1149, 1.0
    %v1151 = vrcp.pop %v1150
    %v1152 = vmul.f32 %v1150, %v1151
    %v1153 = vsub.f32 1.0, %v1152
    %v1154 = vmul.f32 %v1151, %v1153
    %v1155 = vadd.f32 %v1151, %v1154
    %vm1156 = vweird.f32 %v1150
    %vm1157 = vweird.f32 %v1151
    %vm1158 = vmor %vm1156, %vm1157
    %v1159 = vsel %vm1158, %v1151, %v1155
    %v1160 = vand.u32 2147483647, %v1150
    %vm1161 = vcmp.eq.f32.partialorder %v1160, 8.507059e+37
    %v1162 = vand.u32 %v1150, 2147483648
    %v1163 = vor.u32 1.1754944e-38, %v1162
    %v1164 = vsel %vm1161, %v1163, %v1159
    %v1165 = vmul.f32 1.0, %v1164
    %v1167 = vsel %vm113, %v1165, 0
    %v1170 = vsel %vm113, %v93, 0
    %v1173 = vsel %vm113, %v94, 0
    %v1176 = vsel %vm113, %v95, 0
    %v1179 = vsel %vm113, %v96, 0
    %1181 = vmatpush.xpose.msra.mxu0 0.0
    %1182 = vmatpush.xpose.msra.mxu0 0.0
    %1183 = vmatpush.xpose.msra.mxu0 0.0
    %1184 = vmatpush.xpose.msra.mxu0 0.0
    %1185 = vmatpush.xpose.msra.mxu0 0.0
    %1186 = vmatpush.xpose.msra.mxu0 0.0
    %1187 = vmatpush.xpose.msra.mxu0 0.0
    %1188 = vmatpush.xpose.msra.mxu0 0.0
    %1189 = vmatpush.xpose.msra.mxu0 0.0
    %1190 = vmatpush.xpose.msra.mxu0 0.0
    %1191 = vmatpush.xpose.msra.mxu0 0.0
    %1192 = vmatpush.xpose.msra.mxu0 0.0
    %1193 = vmatpush.xpose.msra.mxu0 %v1179
    %1194 = vmatpush.xpose.msra.mxu0 %v1176
    %1195 = vmatpush.xpose.msra.mxu0 %v1173
    %1196 = vmatpush.xpose.msra.mxu0 %v1170
    %1197 = vmatmul.f32.gmra.mxu0 %v1167
    %v1198 = vpop.f32.mrf.mxu0
    %v1199 = vadd.f32 %v97, %v1198
    %1200 = vdwg.mxu0
    %vm1201 = vcmp.gt.f32.partialorder %v1199, 0.0
    %v1202 = vmul.f32 %v1199, 1.442695
    %v1203 = vpow.pop %v1202
    %v1204 = vsub.f32 %v1203, 1.0
    %v1205 = vsel %vm1201, %v1199, %v1204
    %v1207 = vsel %vm151, %v1205, 0
    %v1210 = vsel %vm151, %v98, 0
    %v1213 = vsel %vm151, %v99, 0
    %1215 = vmatpush.xpose.msra.mxu0 0.0
    %1216 = vmatpush.xpose.msra.mxu0 0.0
    %1217 = vmatpush.xpose.msra.mxu0 0.0
    %1218 = vmatpush.xpose.msra.mxu0 0.0
    %1219 = vmatpush.xpose.msra.mxu0 0.0
    %1220 = vmatpush.xpose.msra.mxu0 0.0
    %1221 = vmatpush.xpose.msra.mxu0 0.0
    %1222 = vmatpush.xpose.msra.mxu0 0.0
    %1223 = vmatpush.xpose.msra.mxu0 0.0
    %1224 = vmatpush.xpose.msra.mxu0 0.0
    %1225 = vmatpush.xpose.msra.mxu0 0.0
    %1226 = vmatpush.xpose.msra.mxu0 0.0
    %1227 = vmatpush.xpose.msra.mxu0 0.0
    %1228 = vmatpush.xpose.msra.mxu0 0.0
    %1229 = vmatpush.xpose.msra.mxu0 %v1213
    %1230 = vmatpush.xpose.msra.mxu0 %v1210
    %1231 = vmatmul.f32.gmra.mxu0 %v1207
    %v1232 = vpop.f32.mrf.mxu0
    %v1233 = vadd.f32 %v100, %v1232
    %1234 = vdwg.mxu0
    %v1235 = vadd.f32 %v1233, %v1146
    %v1236 = vsub.f32 0.0, %v1235
    %v1237 = vmul.f32 %v1236, 1.442695
    %v1238 = vpow.pop %v1237
    %v1239 = vadd.f32 %v1238, 1.0
    %v1240 = vrcp.pop %v1239
    %v1241 = vmul.f32 %v1239, %v1240
    %v1242 = vsub.f32 1.0, %v1241
    %v1243 = vmul.f32 %v1240, %v1242
    %v1244 = vadd.f32 %v1240, %v1243
    %vm1245 = vweird.f32 %v1239
    %vm1246 = vweird.f32 %v1240
    %vm1247 = vmor %vm1245, %vm1246
    %v1248 = vsel %vm1247, %v1240, %v1244
    %v1249 = vand.u32 2147483647, %v1239
    %vm1250 = vcmp.eq.f32.partialorder %v1249, 8.507059e+37
    %v1251 = vand.u32 %v1239, 2147483648
    %v1252 = vor.u32 1.1754944e-38, %v1251
    %v1253 = vsel %vm1250, %v1252, %v1248
    %v1254 = vmul.f32 1.0, %v1253
    %v1256 = vsel %vm113, %v1254, 0
    %v1259 = vsel %vm113, %v101, 0
    %v1262 = vsel %vm113, %v102, 0
    %v1265 = vsel %vm113, %v103, 0
    %v1268 = vsel %vm113, %v104, 0
    %1270 = vmatpush.xpose.msra.mxu0 0.0
    %1271 = vmatpush.xpose.msra.mxu0 0.0
    %1272 = vmatpush.xpose.msra.mxu0 0.0
    %1273 = vmatpush.xpose.msra.mxu0 0.0
    %1274 = vmatpush.xpose.msra.mxu0 0.0
    %1275 = vmatpush.xpose.msra.mxu0 0.0
    %1276 = vmatpush.xpose.msra.mxu0 0.0
    %1277 = vmatpush.xpose.msra.mxu0 0.0
    %1278 = vmatpush.xpose.msra.mxu0 0.0
    %1279 = vmatpush.xpose.msra.mxu0 0.0
    %1280 = vmatpush.xpose.msra.mxu0 0.0
    %1281 = vmatpush.xpose.msra.mxu0 0.0
    %1282 = vmatpush.xpose.msra.mxu0 %v1268
    %1283 = vmatpush.xpose.msra.mxu0 %v1265
    %1284 = vmatpush.xpose.msra.mxu0 %v1262
    %1285 = vmatpush.xpose.msra.mxu0 %v1259
    %1286 = vmatmul.f32.gmra.mxu0 %v1256
    %v1287 = vpop.f32.mrf.mxu0
    %v1288 = vadd.f32 %v105, %v1287
    %1289 = vdwg.mxu0
    %vm1290 = vcmp.gt.f32.partialorder %v1288, 0.0
    %v1291 = vmul.f32 %v1288, 1.442695
    %v1292 = vpow.pop %v1291
    %v1293 = vsub.f32 %v1292, 1.0
    %v1294 = vsel %vm1290, %v1288, %v1293
    %v1296 = vsel %vm151, %v1294, 0
    %v1299 = vsel %vm151, %v106, 0
    %v1302 = vsel %vm151, %v107, 0
    %1304 = vmatpush.xpose.msra.mxu0 0.0
    %1305 = vmatpush.xpose.msra.mxu0 0.0
    %1306 = vmatpush.xpose.msra.mxu0 0.0
    %1307 = vmatpush.xpose.msra.mxu0 0.0
    %1308 = vmatpush.xpose.msra.mxu0 0.0
    %1309 = vmatpush.xpose.msra.mxu0 0.0
    %1310 = vmatpush.xpose.msra.mxu0 0.0
    %1311 = vmatpush.xpose.msra.mxu0 0.0
    %1312 = vmatpush.xpose.msra.mxu0 0.0
    %1313 = vmatpush.xpose.msra.mxu0 0.0
    %1314 = vmatpush.xpose.msra.mxu0 0.0
    %1315 = vmatpush.xpose.msra.mxu0 0.0
    %1316 = vmatpush.xpose.msra.mxu0 0.0
    %1317 = vmatpush.xpose.msra.mxu0 0.0
    %1318 = vmatpush.xpose.msra.mxu0 %v1302
    %1319 = vmatpush.xpose.msra.mxu0 %v1299
    %1320 = vmatmul.f32.gmra.mxu0 %v1296
    %v1321 = vpop.f32.mrf.mxu0
    %v1322 = vadd.f32 %v108, %v1321
    %1323 = vdwg.mxu0
    %v1324 = vadd.f32 %v1322, %v1235
    %vm1325 = vcmask 122880
    %1326 = vst.msk [vmem:[#allocation2] sm:$0x1] %vm1325, %v1324
    %s1327 = scalar_lea.vmem %s6, 32
    %v1328 = vld [vmem:[%s1327] sm:$0xff]
    %v1329 = vld [vmem:[%s1327 + $0x8] sm:$0xff]
    %v1330 = vld [vmem:[%s1327 + $0x10] sm:$0xff]
    %v1331 = vld [vmem:[%s1327 + $0x18] sm:$0xff]
    %1336 = vrot.lane.b32.xlu0 %v1328, 127
    %v1337 = vpop.permute.xlu0 %1336
    %1338 = vrot.lane.b32.xlu0 %v1329, 127
    %v1339 = vpop.permute.xlu0 %1338
    %1340 = vrot.lane.b32.xlu0 %v1330, 127
    %v1341 = vpop.permute.xlu0 %1340
    %1342 = vrot.lane.b32.xlu0 %v1331, 127
    %v1343 = vpop.permute.xlu0 %1342
    %1348 = vrot.lane.b32.xlu0 %v1328, 126
    %v1349 = vpop.permute.xlu0 %1348
    %1350 = vrot.lane.b32.xlu0 %v1329, 126
    %v1351 = vpop.permute.xlu0 %1350
    %1352 = vrot.lane.b32.xlu0 %v1330, 126
    %v1353 = vpop.permute.xlu0 %1352
    %1354 = vrot.lane.b32.xlu0 %v1331, 126
    %v1355 = vpop.permute.xlu0 %1354
    %1360 = vmatpush.msra.mxu0 0.0
    %1361 = vmatpush.msra.mxu0 0.0
    %1362 = vmatpush.msra.mxu0 0.0
    %1363 = vmatpush.msra.mxu0 0.0
    %1364 = vmatpush.msra.mxu0 %v1355
    %1365 = vmatpush.msra.mxu0 %v1353
    %1366 = vmatpush.msra.mxu0 %v1351
    %1367 = vmatpush.msra.mxu0 %v1349
    %1368 = vmatpush.msra.mxu0 %v1343
    %1369 = vmatpush.msra.mxu0 %v1341
    %1370 = vmatpush.msra.mxu0 %v1339
    %1371 = vmatpush.msra.mxu0 %v1337
    %1372 = vmatpush.msra.mxu0 %v1331
    %1373 = vmatpush.msra.mxu0 %v1330
    %1374 = vmatpush.msra.mxu0 %v1329
    %1375 = vmatpush.msra.mxu0 %v1328
    %1376 = vmatmul.f32.gmra.mxu0 %v323
    %v1377 = vpop.f32.mrf.mxu0
    %v1378 = vadd.f32 %v304, %v1377
    %1379 = vmatmul.f32.gmra.mxu0 %v326
    %v1380 = vpop.f32.mrf.mxu0
    %v1381 = vadd.f32 %v309, %v1380
    %1382 = vmatmul.f32.gmra.mxu0 %v329
    %v1383 = vpop.f32.mrf.mxu0
    %v1384 = vadd.f32 %v314, %v1383
    %1385 = vmatmul.f32.gmra.mxu0 %v332
    %v1386 = vpop.f32.mrf.mxu0
    %v1387 = vadd.f32 %v319, %v1386
    %1388 = vdwg.mxu0
    %vm1389 = vcmp.gt.f32.partialorder %v1378, 0.0
    %vm1390 = vcmp.gt.f32.partialorder %v1381, 0.0
    %vm1391 = vcmp.gt.f32.partialorder %v1384, 0.0
    %vm1392 = vcmp.gt.f32.partialorder %v1387, 0.0
    %v1393 = vmul.f32 %v1378, 1.442695
    %v1394 = vpow.pop %v1393
    %v1395 = vmul.f32 %v1381, 1.442695
    %v1396 = vpow.pop %v1395
    %v1397 = vmul.f32 %v1384, 1.442695
    %v1398 = vpow.pop %v1397
    %v1399 = vmul.f32 %v1387, 1.442695
    %v1400 = vpow.pop %v1399
    %v1401 = vsub.f32 %v1394, 1.0
    %v1402 = vsub.f32 %v1396, 1.0
    %v1403 = vsub.f32 %v1398, 1.0
    %v1404 = vsub.f32 %v1400, 1.0
    %v1405 = vmul.f32 %v1401, 1.6732632
    %v1406 = vmul.f32 %v1402, 1.6732632
    %v1407 = vmul.f32 %v1403, 1.6732632
    %v1408 = vmul.f32 %v1404, 1.6732632
    %v1409 = vsel %vm1389, %v1378, %v1405
    %v1410 = vsel %vm1390, %v1381, %v1406
    %v1411 = vsel %vm1391, %v1384, %v1407
    %v1412 = vsel %vm1392, %v1387, %v1408
    %v1413 = vmul.f32 %v1409, 1.050701
    %v1414 = vmul.f32 %v1410, 1.050701
    %v1415 = vmul.f32 %v1411, 1.050701
    %v1416 = vmul.f32 %v1412, 1.050701
    %1421 = vrot.lane.b32.xlu0 %v1413, 126
    %v1422 = vpop.permute.xlu0 %1421
    %1423 = vrot.lane.b32.xlu0 %v1414, 126
    %v1424 = vpop.permute.xlu0 %1423
    %1425 = vrot.lane.b32.xlu0 %v1415, 126
    %v1426 = vpop.permute.xlu0 %1425
    %1427 = vrot.lane.b32.xlu0 %v1416, 126
    %v1428 = vpop.permute.xlu0 %1427
    %1433 = vrot.lane.b32.xlu0 %v1413, 124
    %v1434 = vpop.permute.xlu0 %1433
    %1435 = vrot.lane.b32.xlu0 %v1414, 124
    %v1436 = vpop.permute.xlu0 %1435
    %1437 = vrot.lane.b32.xlu0 %v1415, 124
    %v1438 = vpop.permute.xlu0 %1437
    %1439 = vrot.lane.b32.xlu0 %v1416, 124
    %v1440 = vpop.permute.xlu0 %1439
    %1445 = vmatpush.msra.mxu0 0.0
    %1446 = vmatpush.msra.mxu0 0.0
    %1447 = vmatpush.msra.mxu0 0.0
    %1448 = vmatpush.msra.mxu0 0.0
    %1449 = vmatpush.msra.mxu0 %v1440
    %1450 = vmatpush.msra.mxu0 %v1438
    %1451 = vmatpush.msra.mxu0 %v1436
    %1452 = vmatpush.msra.mxu0 %v1434
    %1453 = vmatpush.msra.mxu0 %v1428
    %1454 = vmatpush.msra.mxu0 %v1426
    %1455 = vmatpush.msra.mxu0 %v1424
    %1456 = vmatpush.msra.mxu0 %v1422
    %1457 = vmatpush.msra.mxu0 %v1416
    %1458 = vmatpush.msra.mxu0 %v1415
    %1459 = vmatpush.msra.mxu0 %v1414
    %1460 = vmatpush.msra.mxu0 %v1413
    %1461 = vmatmul.f32.gmra.mxu0 %v440
    %v1462 = vpop.f32.mrf.mxu0
    %v1463 = vadd.f32 %v422, %v1462
    %1464 = vmatmul.f32.gmra.mxu0 %v443
    %v1465 = vpop.f32.mrf.mxu0
    %v1466 = vadd.f32 %v427, %v1465
    %1467 = vmatmul.f32.gmra.mxu0 %v446
    %v1468 = vpop.f32.mrf.mxu0
    %v1469 = vadd.f32 %v432, %v1468
    %1470 = vmatmul.f32.gmra.mxu0 %v449
    %v1471 = vpop.f32.mrf.mxu0
    %v1472 = vadd.f32 %v437, %v1471
    %1473 = vdwg.mxu0
    %vm1474 = vcmp.gt.f32.partialorder %v1463, 0.0
    %vm1475 = vcmp.gt.f32.partialorder %v1466, 0.0
    %vm1476 = vcmp.gt.f32.partialorder %v1469, 0.0
    %vm1477 = vcmp.gt.f32.partialorder %v1472, 0.0
    %v1478 = vmul.f32 %v1463, 1.442695
    %v1479 = vpow.pop %v1478
    %v1480 = vmul.f32 %v1466, 1.442695
    %v1481 = vpow.pop %v1480
    %v1482 = vmul.f32 %v1469, 1.442695
    %v1483 = vpow.pop %v1482
    %v1484 = vmul.f32 %v1472, 1.442695
    %v1485 = vpow.pop %v1484
    %v1486 = vsub.f32 %v1479, 1.0
    %v1487 = vsub.f32 %v1481, 1.0
    %v1488 = vsub.f32 %v1483, 1.0
    %v1489 = vsub.f32 %v1485, 1.0
    %v1490 = vmul.f32 %v1486, 1.6732632
    %v1491 = vmul.f32 %v1487, 1.6732632
    %v1492 = vmul.f32 %v1488, 1.6732632
    %v1493 = vmul.f32 %v1489, 1.6732632
    %v1494 = vsel %vm1474, %v1463, %v1490
    %v1495 = vsel %vm1475, %v1466, %v1491
    %v1496 = vsel %vm1476, %v1469, %v1492
    %v1497 = vsel %vm1477, %v1472, %v1493
    %v1498 = vmul.f32 %v1494, 1.050701
    %v1499 = vmul.f32 %v1495, 1.050701
    %v1500 = vmul.f32 %v1496, 1.050701
    %v1501 = vmul.f32 %v1497, 1.050701
    %1506 = vrot.lane.b32.xlu0 %v1498, 125
    %v1507 = vpop.permute.xlu0 %1506
    %1508 = vrot.lane.b32.xlu0 %v1499, 125
    %v1509 = vpop.permute.xlu0 %1508
    %1510 = vrot.lane.b32.xlu0 %v1500, 125
    %v1511 = vpop.permute.xlu0 %1510
    %1512 = vrot.lane.b32.xlu0 %v1501, 125
    %v1513 = vpop.permute.xlu0 %1512
    %1518 = vrot.lane.b32.xlu0 %v1498, 122
    %v1519 = vpop.permute.xlu0 %1518
    %1520 = vrot.lane.b32.xlu0 %v1499, 122
    %v1521 = vpop.permute.xlu0 %1520
    %1522 = vrot.lane.b32.xlu0 %v1500, 122
    %v1523 = vpop.permute.xlu0 %1522
    %1524 = vrot.lane.b32.xlu0 %v1501, 122
    %v1525 = vpop.permute.xlu0 %1524
    %1530 = vmatpush.msra.mxu0 0.0
    %1531 = vmatpush.msra.mxu0 0.0
    %1532 = vmatpush.msra.mxu0 0.0
    %1533 = vmatpush.msra.mxu0 0.0
    %1534 = vmatpush.msra.mxu0 %v1525
    %1535 = vmatpush.msra.mxu0 %v1523
    %1536 = vmatpush.msra.mxu0 %v1521
    %1537 = vmatpush.msra.mxu0 %v1519
    %1538 = vmatpush.msra.mxu0 %v1513
    %1539 = vmatpush.msra.mxu0 %v1511
    %1540 = vmatpush.msra.mxu0 %v1509
    %1541 = vmatpush.msra.mxu0 %v1507
    %1542 = vmatpush.msra.mxu0 %v1501
    %1543 = vmatpush.msra.mxu0 %v1500
    %1544 = vmatpush.msra.mxu0 %v1499
    %1545 = vmatpush.msra.mxu0 %v1498
    %1546 = vmatmul.f32.gmra.mxu0 %v557
    %v1547 = vpop.f32.mrf.mxu0
    %v1548 = vadd.f32 %v539, %v1547
    %1549 = vmatmul.f32.gmra.mxu0 %v560
    %v1550 = vpop.f32.mrf.mxu0
    %v1551 = vadd.f32 %v544, %v1550
    %1552 = vmatmul.f32.gmra.mxu0 %v563
    %v1553 = vpop.f32.mrf.mxu0
    %v1554 = vadd.f32 %v549, %v1553
    %1555 = vmatmul.f32.gmra.mxu0 %v566
    %v1556 = vpop.f32.mrf.mxu0
    %v1557 = vadd.f32 %v554, %v1556
    %1558 = vdwg.mxu0
    %vm1559 = vcmp.gt.f32.partialorder %v1548, 0.0
    %vm1560 = vcmp.gt.f32.partialorder %v1551, 0.0
    %vm1561 = vcmp.gt.f32.partialorder %v1554, 0.0
    %vm1562 = vcmp.gt.f32.partialorder %v1557, 0.0
    %v1563 = vmul.f32 %v1548, 1.442695
    %v1564 = vpow.pop %v1563
    %v1565 = vmul.f32 %v1551, 1.442695
    %v1566 = vpow.pop %v1565
    %v1567 = vmul.f32 %v1554, 1.442695
    %v1568 = vpow.pop %v1567
    %v1569 = vmul.f32 %v1557, 1.442695
    %v1570 = vpow.pop %v1569
    %v1571 = vsub.f32 %v1564, 1.0
    %v1572 = vsub.f32 %v1566, 1.0
    %v1573 = vsub.f32 %v1568, 1.0
    %v1574 = vsub.f32 %v1570, 1.0
    %v1575 = vmul.f32 %v1571, 1.6732632
    %v1576 = vmul.f32 %v1572, 1.6732632
    %v1577 = vmul.f32 %v1573, 1.6732632
    %v1578 = vmul.f32 %v1574, 1.6732632
    %v1579 = vsel %vm1559, %v1548, %v1575
    %v1580 = vsel %vm1560, %v1551, %v1576
    %v1581 = vsel %vm1561, %v1554, %v1577
    %v1582 = vsel %vm1562, %v1557, %v1578
    %v1583 = vmul.f32 %v1579, 1.050701
    %v1584 = vmul.f32 %v1580, 1.050701
    %v1585 = vmul.f32 %v1581, 1.050701
    %v1586 = vmul.f32 %v1582, 1.050701
    %1587 = vxpose.xlu0.b32.start [1/16] %v1583, 128
    %1588 = vxpose.xlu0.b32.cont [2/16] %v1584, 128
    %1589 = vxpose.xlu0.b32.cont [3/16] %v1585, 128
    %1590 = vxpose.xlu0.b32.cont [4/16] %v1586, 128
    %1591 = vxpose.xlu0.b32.cont [5/16] 0.0, 128
    %1592 = vxpose.xlu0.b32.cont [6/16] 0.0, 128
    %1593 = vxpose.xlu0.b32.cont [7/16] 0.0, 128
    %1594 = vxpose.xlu0.b32.cont [8/16] 0.0, 128
    %1595 = vxpose.xlu0.b32.cont [9/16] 0.0, 128
    %1596 = vxpose.xlu0.b32.cont [10/16] 0.0, 128
    %1597 = vxpose.xlu0.b32.cont [11/16] 0.0, 128
    %1598 = vxpose.xlu0.b32.cont [12/16] 0.0, 128
    %1599 = vxpose.xlu0.b32.cont [13/16] 0.0, 128
    %1600 = vxpose.xlu0.b32.cont [14/16] 0.0, 128
    %1601 = vxpose.xlu0.b32.cont [15/16] 0.0, 128
    %1602 = vxpose.xlu0.b32.end [16/16] 0.0, 128
    %v1603 = vpop.trf.xlu0
    %v1604 = vpop.trf.xlu0
    %v1605 = vpop.trf.xlu0
    %v1606 = vpop.trf.xlu0
    %v1607 = vpop.trf.xlu0
    %v1608 = vpop.trf.xlu0
    %v1609 = vpop.trf.xlu0
    %v1610 = vpop.trf.xlu0
    %v1611 = vpop.trf.xlu0
    %v1612 = vpop.trf.xlu0
    %v1613 = vpop.trf.xlu0
    %v1614 = vpop.trf.xlu0
    %v1615 = vpop.trf.xlu0
    %v1616 = vpop.trf.xlu0
    %v1617 = vpop.trf.xlu0
    %v1618 = vpop.trf.xlu0
    %v1620 = vsel %vm151, %v1603, 0
    %v1623 = vsel %vm151, %v1604, 0
    %v1626 = vsel %vm151, %v1605, 0
    %1628 = vmatpush.xpose.msra.mxu0 0.0
    %1629 = vmatpush.xpose.msra.mxu0 0.0
    %1630 = vmatpush.xpose.msra.mxu0 0.0
    %1631 = vmatpush.xpose.msra.mxu0 0.0
    %1632 = vmatpush.xpose.msra.mxu0 0.0
    %1633 = vmatpush.xpose.msra.mxu0 0.0
    %1634 = vmatpush.xpose.msra.mxu0 0.0
    %1635 = vmatpush.xpose.msra.mxu0 0.0
    %1636 = vmatpush.xpose.msra.mxu0 0.0
    %1637 = vmatpush.xpose.msra.mxu0 0.0
    %1638 = vmatpush.xpose.msra.mxu0 0.0
    %1639 = vmatpush.xpose.msra.mxu0 0.0
    %1640 = vmatpush.xpose.msra.mxu0 0.0
    %1641 = vmatpush.xpose.msra.mxu0 0.0
    %1642 = vmatpush.xpose.msra.mxu0 %v670
    %1643 = vmatpush.xpose.msra.mxu0 %v667
    %1644 = vmatmul.f32.gmra.mxu0 %v1620
    %v1645 = vpop.f32.mrf.mxu0
    %v1646 = vadd.f32 0.0, %v1645
    %1647 = vmatmul.f32.gmra.mxu0 %v1623
    %v1648 = vpop.f32.mrf.mxu0
    %v1649 = vadd.f32 0.0, %v1648
    %1650 = vmatmul.f32.gmra.mxu0 %v1626
    %v1651 = vpop.f32.mrf.mxu0
    %v1652 = vadd.f32 0.0, %v1651
    %1653 = vdwg.mxu0
    %v1654 = vsel %vm113, %v1646, -inf
    %v1655 = vsel %vm113, %v1649, -inf
    %v1656 = vsel %vm700, %v1652, -inf
    %v1657 = vmax.f32 %v1654, %v1655
    %v1658 = vmax.f32 %v1657, %v1656
    %v1659 = vrot.slane %v1658, 4
    %v1660 = vmax.f32 %v1658, %v1659
    %v1661 = vrot.slane %v1660, 2
    %v1662 = vmax.f32 %v1660, %v1661
    %v1663 = vrot.slane %v1662, 1
    %v1664 = vmax.f32 %v1662, %v1663
    %v1665 = vsub.f32 %v1646, %v1664
    %v1666 = vsub.f32 %v1649, %v1664
    %v1667 = vsub.f32 %v1652, %v1664
    %v1668 = vmul.f32 %v1665, 1.442695
    %v1669 = vpow.pop %v1668
    %v1670 = vmul.f32 %v1666, 1.442695
    %v1671 = vpow.pop %v1670
    %v1672 = vmul.f32 %v1667, 1.442695
    %v1673 = vpow.pop %v1672
    %v1674 = vsel %vm113, %v1669, 0.0
    %v1675 = vsel %vm113, %v1671, 0.0
    %v1676 = vadd.f32 %v1674, %v1675
    %v1677 = vsel %vm700, %v1673, 0.0
    %v1678 = vadd.f32 %v1676, %v1677
    %v1679 = vrot.slane %v1678, 4
    %v1680 = vadd.f32 %v1678, %v1679
    %v1681 = vrot.slane %v1680, 2
    %v1682 = vadd.f32 %v1680, %v1681
    %v1683 = vrot.slane %v1682, 1
    %v1684 = vadd.f32 %v1682, %v1683
    %v1685 = vmul.f32 %v1669, %v1646
    %v1686 = vmul.f32 %v1671, %v1649
    %v1687 = vmul.f32 %v1673, %v1652
    %v1688 = vsel %vm113, %v1685, 0.0
    %v1689 = vsel %vm113, %v1686, 0.0
    %v1690 = vadd.f32 %v1688, %v1689
    %v1691 = vsel %vm700, %v1687, 0.0
    %v1692 = vadd.f32 %v1690, %v1691
    %v1693 = vrot.slane %v1692, 4
    %v1694 = vadd.f32 %v1692, %v1693
    %v1695 = vrot.slane %v1694, 2
    %v1696 = vadd.f32 %v1694, %v1695
    %v1697 = vrot.slane %v1696, 1
    %v1698 = vadd.f32 %v1696, %v1697
    %v1699 = vrcp.pop %v1684
    %v1700 = vmul.f32 %v1684, %v1699
    %v1701 = vsub.f32 1.0, %v1700
    %v1702 = vmul.f32 %v1699, %v1701
    %v1703 = vadd.f32 %v1699, %v1702
    %vm1704 = vweird.f32 %v1684
    %vm1705 = vweird.f32 %v1699
    %vm1706 = vmor %vm1704, %vm1705
    %v1707 = vsel %vm1706, %v1699, %v1703
    %v1708 = vand.u32 2147483647, %v1684
    %vm1709 = vcmp.eq.f32.partialorder %v1708, 8.507059e+37
    %v1710 = vand.u32 %v1684, 2147483648
    %v1711 = vor.u32 1.1754944e-38, %v1710
    %v1712 = vsel %vm1709, %v1711, %v1707
    %v1713 = vmul.f32 %v1698, %v1712
    %s1714 = scalar_lea.vmem %s6, 96
    %v1715 = vld [vmem:[%s1714] sm:$0xff]
    %v1716 = vld [vmem:[%s1714 + $0x8] sm:$0xff]
    %v1717 = vld [vmem:[%s1714 + $0x10] sm:$0xff]
    %v1718 = vld [vmem:[%s1714 + $0x18] sm:$0xff]
    %1723 = vrot.lane.b32.xlu0 %v1715, 127
    %v1724 = vpop.permute.xlu0 %1723
    %1725 = vrot.lane.b32.xlu0 %v1716, 127
    %v1726 = vpop.permute.xlu0 %1725
    %1727 = vrot.lane.b32.xlu0 %v1717, 127
    %v1728 = vpop.permute.xlu0 %1727
    %1729 = vrot.lane.b32.xlu0 %v1718, 127
    %v1730 = vpop.permute.xlu0 %1729
    %1735 = vrot.lane.b32.xlu0 %v1715, 126
    %v1736 = vpop.permute.xlu0 %1735
    %1737 = vrot.lane.b32.xlu0 %v1716, 126
    %v1738 = vpop.permute.xlu0 %1737
    %1739 = vrot.lane.b32.xlu0 %v1717, 126
    %v1740 = vpop.permute.xlu0 %1739
    %1741 = vrot.lane.b32.xlu0 %v1718, 126
    %v1742 = vpop.permute.xlu0 %1741
    %1747 = vmatpush.msra.mxu0 0.0
    %1748 = vmatpush.msra.mxu0 0.0
    %1749 = vmatpush.msra.mxu0 0.0
    %1750 = vmatpush.msra.mxu0 0.0
    %1751 = vmatpush.msra.mxu0 %v1742
    %1752 = vmatpush.msra.mxu0 %v1740
    %1753 = vmatpush.msra.mxu0 %v1738
    %1754 = vmatpush.msra.mxu0 %v1736
    %1755 = vmatpush.msra.mxu0 %v1730
    %1756 = vmatpush.msra.mxu0 %v1728
    %1757 = vmatpush.msra.mxu0 %v1726
    %1758 = vmatpush.msra.mxu0 %v1724
    %1759 = vmatpush.msra.mxu0 %v1718
    %1760 = vmatpush.msra.mxu0 %v1717
    %1761 = vmatpush.msra.mxu0 %v1716
    %1762 = vmatpush.msra.mxu0 %v1715
    %1763 = vmatmul.f32.gmra.mxu0 %v323
    %v1764 = vpop.f32.mrf.mxu0
    %v1765 = vadd.f32 %v304, %v1764
    %1766 = vmatmul.f32.gmra.mxu0 %v326
    %v1767 = vpop.f32.mrf.mxu0
    %v1768 = vadd.f32 %v309, %v1767
    %1769 = vmatmul.f32.gmra.mxu0 %v329
    %v1770 = vpop.f32.mrf.mxu0
    %v1771 = vadd.f32 %v314, %v1770
    %1772 = vmatmul.f32.gmra.mxu0 %v332
    %v1773 = vpop.f32.mrf.mxu0
    %v1774 = vadd.f32 %v319, %v1773
    %1775 = vdwg.mxu0
    %vm1776 = vcmp.gt.f32.partialorder %v1765, 0.0
    %vm1777 = vcmp.gt.f32.partialorder %v1768, 0.0
    %vm1778 = vcmp.gt.f32.partialorder %v1771, 0.0
    %vm1779 = vcmp.gt.f32.partialorder %v1774, 0.0
    %v1780 = vmul.f32 %v1765, 1.442695
    %v1781 = vpow.pop %v1780
    %v1782 = vmul.f32 %v1768, 1.442695
    %v1783 = vpow.pop %v1782
    %v1784 = vmul.f32 %v1771, 1.442695
    %v1785 = vpow.pop %v1784
    %v1786 = vmul.f32 %v1774, 1.442695
    %v1787 = vpow.pop %v1786
    %v1788 = vsub.f32 %v1781, 1.0
    %v1789 = vsub.f32 %v1783, 1.0
    %v1790 = vsub.f32 %v1785, 1.0
    %v1791 = vsub.f32 %v1787, 1.0
    %v1792 = vmul.f32 %v1788, 1.6732632
    %v1793 = vmul.f32 %v1789, 1.6732632
    %v1794 = vmul.f32 %v1790, 1.6732632
    %v1795 = vmul.f32 %v1791, 1.6732632
    %v1796 = vsel %vm1776, %v1765, %v1792
    %v1797 = vsel %vm1777, %v1768, %v1793
    %v1798 = vsel %vm1778, %v1771, %v1794
    %v1799 = vsel %vm1779, %v1774, %v1795
    %v1800 = vmul.f32 %v1796, 1.050701
    %v1801 = vmul.f32 %v1797, 1.050701
    %v1802 = vmul.f32 %v1798, 1.050701
    %v1803 = vmul.f32 %v1799, 1.050701
    %1808 = vrot.lane.b32.xlu0 %v1800, 126
    %v1809 = vpop.permute.xlu0 %1808
    %1810 = vrot.lane.b32.xlu0 %v1801, 126
    %v1811 = vpop.permute.xlu0 %1810
    %1812 = vrot.lane.b32.xlu0 %v1802, 126
    %v1813 = vpop.permute.xlu0 %1812
    %1814 = vrot.lane.b32.xlu0 %v1803, 126
    %v1815 = vpop.permute.xlu0 %1814
    %1820 = vrot.lane.b32.xlu0 %v1800, 124
    %v1821 = vpop.permute.xlu0 %1820
    %1822 = vrot.lane.b32.xlu0 %v1801, 124
    %v1823 = vpop.permute.xlu0 %1822
    %1824 = vrot.lane.b32.xlu0 %v1802, 124
    %v1825 = vpop.permute.xlu0 %1824
    %1826 = vrot.lane.b32.xlu0 %v1803, 124
    %v1827 = vpop.permute.xlu0 %1826
    %1832 = vmatpush.msra.mxu0 0.0
    %1833 = vmatpush.msra.mxu0 0.0
    %1834 = vmatpush.msra.mxu0 0.0
    %1835 = vmatpush.msra.mxu0 0.0
    %1836 = vmatpush.msra.mxu0 %v1827
    %1837 = vmatpush.msra.mxu0 %v1825
    %1838 = vmatpush.msra.mxu0 %v1823
    %1839 = vmatpush.msra.mxu0 %v1821
    %1840 = vmatpush.msra.mxu0 %v1815
    %1841 = vmatpush.msra.mxu0 %v1813
    %1842 = vmatpush.msra.mxu0 %v1811
    %1843 = vmatpush.msra.mxu0 %v1809
    %1844 = vmatpush.msra.mxu0 %v1803
    %1845 = vmatpush.msra.mxu0 %v1802
    %1846 = vmatpush.msra.mxu0 %v1801
    %1847 = vmatpush.msra.mxu0 %v1800
    %1848 = vmatmul.f32.gmra.mxu0 %v440
    %v1849 = vpop.f32.mrf.mxu0
    %v1850 = vadd.f32 %v422, %v1849
    %1851 = vmatmul.f32.gmra.mxu0 %v443
    %v1852 = vpop.f32.mrf.mxu0
    %v1853 = vadd.f32 %v427, %v1852
    %1854 = vmatmul.f32.gmra.mxu0 %v446
    %v1855 = vpop.f32.mrf.mxu0
    %v1856 = vadd.f32 %v432, %v1855
    %1857 = vmatmul.f32.gmra.mxu0 %v449
    %v1858 = vpop.f32.mrf.mxu0
    %v1859 = vadd.f32 %v437, %v1858
    %1860 = vdwg.mxu0
    %vm1861 = vcmp.gt.f32.partialorder %v1850, 0.0
    %vm1862 = vcmp.gt.f32.partialorder %v1853, 0.0
    %vm1863 = vcmp.gt.f32.partialorder %v1856, 0.0
    %vm1864 = vcmp.gt.f32.partialorder %v1859, 0.0
    %v1865 = vmul.f32 %v1850, 1.442695
    %v1866 = vpow.pop %v1865
    %v1867 = vmul.f32 %v1853, 1.442695
    %v1868 = vpow.pop %v1867
    %v1869 = vmul.f32 %v1856, 1.442695
    %v1870 = vpow.pop %v1869
    %v1871 = vmul.f32 %v1859, 1.442695
    %v1872 = vpow.pop %v1871
    %v1873 = vsub.f32 %v1866, 1.0
    %v1874 = vsub.f32 %v1868, 1.0
    %v1875 = vsub.f32 %v1870, 1.0
    %v1876 = vsub.f32 %v1872, 1.0
    %v1877 = vmul.f32 %v1873, 1.6732632
    %v1878 = vmul.f32 %v1874, 1.6732632
    %v1879 = vmul.f32 %v1875, 1.6732632
    %v1880 = vmul.f32 %v1876, 1.6732632
    %v1881 = vsel %vm1861, %v1850, %v1877
    %v1882 = vsel %vm1862, %v1853, %v1878
    %v1883 = vsel %vm1863, %v1856, %v1879
    %v1884 = vsel %vm1864, %v1859, %v1880
    %v1885 = vmul.f32 %v1881, 1.050701
    %v1886 = vmul.f32 %v1882, 1.050701
    %v1887 = vmul.f32 %v1883, 1.050701
    %v1888 = vmul.f32 %v1884, 1.050701
    %1893 = vrot.lane.b32.xlu0 %v1885, 125
    %v1894 = vpop.permute.xlu0 %1893
    %1895 = vrot.lane.b32.xlu0 %v1886, 125
    %v1896 = vpop.permute.xlu0 %1895
    %1897 = vrot.lane.b32.xlu0 %v1887, 125
    %v1898 = vpop.permute.xlu0 %1897
    %1899 = vrot.lane.b32.xlu0 %v1888, 125
    %v1900 = vpop.permute.xlu0 %1899
    %1905 = vrot.lane.b32.xlu0 %v1885, 122
    %v1906 = vpop.permute.xlu0 %1905
    %1907 = vrot.lane.b32.xlu0 %v1886, 122
    %v1908 = vpop.permute.xlu0 %1907
    %1909 = vrot.lane.b32.xlu0 %v1887, 122
    %v1910 = vpop.permute.xlu0 %1909
    %1911 = vrot.lane.b32.xlu0 %v1888, 122
    %v1912 = vpop.permute.xlu0 %1911
    %1917 = vmatpush.msra.mxu0 0.0
    %1918 = vmatpush.msra.mxu0 0.0
    %1919 = vmatpush.msra.mxu0 0.0
    %1920 = vmatpush.msra.mxu0 0.0
    %1921 = vmatpush.msra.mxu0 %v1912
    %1922 = vmatpush.msra.mxu0 %v1910
    %1923 = vmatpush.msra.mxu0 %v1908
    %1924 = vmatpush.msra.mxu0 %v1906
    %1925 = vmatpush.msra.mxu0 %v1900
    %1926 = vmatpush.msra.mxu0 %v1898
    %1927 = vmatpush.msra.mxu0 %v1896
    %1928 = vmatpush.msra.mxu0 %v1894
    %1929 = vmatpush.msra.mxu0 %v1888
    %1930 = vmatpush.msra.mxu0 %v1887
    %1931 = vmatpush.msra.mxu0 %v1886
    %1932 = vmatpush.msra.mxu0 %v1885
    %1933 = vmatmul.f32.gmra.mxu0 %v557
    %v1934 = vpop.f32.mrf.mxu0
    %v1935 = vadd.f32 %v539, %v1934
    %1936 = vmatmul.f32.gmra.mxu0 %v560
    %v1937 = vpop.f32.mrf.mxu0
    %v1938 = vadd.f32 %v544, %v1937
    %1939 = vmatmul.f32.gmra.mxu0 %v563
    %v1940 = vpop.f32.mrf.mxu0
    %v1941 = vadd.f32 %v549, %v1940
    %1942 = vmatmul.f32.gmra.mxu0 %v566
    %v1943 = vpop.f32.mrf.mxu0
    %v1944 = vadd.f32 %v554, %v1943
    %1945 = vdwg.mxu0
    %vm1946 = vcmp.gt.f32.partialorder %v1935, 0.0
    %vm1947 = vcmp.gt.f32.partialorder %v1938, 0.0
    %vm1948 = vcmp.gt.f32.partialorder %v1941, 0.0
    %vm1949 = vcmp.gt.f32.partialorder %v1944, 0.0
    %v1950 = vmul.f32 %v1935, 1.442695
    %v1951 = vpow.pop %v1950
    %v1952 = vmul.f32 %v1938, 1.442695
    %v1953 = vpow.pop %v1952
    %v1954 = vmul.f32 %v1941, 1.442695
    %v1955 = vpow.pop %v1954
    %v1956 = vmul.f32 %v1944, 1.442695
    %v1957 = vpow.pop %v1956
    %v1958 = vsub.f32 %v1951, 1.0
    %v1959 = vsub.f32 %v1953, 1.0
    %v1960 = vsub.f32 %v1955, 1.0
    %v1961 = vsub.f32 %v1957, 1.0
    %v1962 = vmul.f32 %v1958, 1.6732632
    %v1963 = vmul.f32 %v1959, 1.6732632
    %v1964 = vmul.f32 %v1960, 1.6732632
    %v1965 = vmul.f32 %v1961, 1.6732632
    %v1966 = vsel %vm1946, %v1935, %v1962
    %v1967 = vsel %vm1947, %v1938, %v1963
    %v1968 = vsel %vm1948, %v1941, %v1964
    %v1969 = vsel %vm1949, %v1944, %v1965
    %v1970 = vmul.f32 %v1966, 1.050701
    %v1971 = vmul.f32 %v1967, 1.050701
    %v1972 = vmul.f32 %v1968, 1.050701
    %v1973 = vmul.f32 %v1969, 1.050701
    %1974 = vxpose.xlu0.b32.start [1/16] %v1970, 128
    %1975 = vxpose.xlu0.b32.cont [2/16] %v1971, 128
    %1976 = vxpose.xlu0.b32.cont [3/16] %v1972, 128
    %1977 = vxpose.xlu0.b32.cont [4/16] %v1973, 128
    %1978 = vxpose.xlu0.b32.cont [5/16] 0.0, 128
    %1979 = vxpose.xlu0.b32.cont [6/16] 0.0, 128
    %1980 = vxpose.xlu0.b32.cont [7/16] 0.0, 128
    %1981 = vxpose.xlu0.b32.cont [8/16] 0.0, 128
    %1982 = vxpose.xlu0.b32.cont [9/16] 0.0, 128
    %1983 = vxpose.xlu0.b32.cont [10/16] 0.0, 128
    %1984 = vxpose.xlu0.b32.cont [11/16] 0.0, 128
    %1985 = vxpose.xlu0.b32.cont [12/16] 0.0, 128
    %1986 = vxpose.xlu0.b32.cont [13/16] 0.0, 128
    %1987 = vxpose.xlu0.b32.cont [14/16] 0.0, 128
    %1988 = vxpose.xlu0.b32.cont [15/16] 0.0, 128
    %1989 = vxpose.xlu0.b32.end [16/16] 0.0, 128
    %v1990 = vpop.trf.xlu0
    %v1991 = vpop.trf.xlu0
    %v1992 = vpop.trf.xlu0
    %v1993 = vpop.trf.xlu0
    %v1994 = vpop.trf.xlu0
    %v1995 = vpop.trf.xlu0
    %v1996 = vpop.trf.xlu0
    %v1997 = vpop.trf.xlu0
    %v1998 = vpop.trf.xlu0
    %v1999 = vpop.trf.xlu0
    %v2000 = vpop.trf.xlu0
    %v2001 = vpop.trf.xlu0
    %v2002 = vpop.trf.xlu0
    %v2003 = vpop.trf.xlu0
    %v2004 = vpop.trf.xlu0
    %v2005 = vpop.trf.xlu0
    %v2007 = vsel %vm151, %v1990, 0
    %v2010 = vsel %vm151, %v1991, 0
    %v2013 = vsel %vm151, %v1992, 0
    %2015 = vmatpush.xpose.msra.mxu0 0.0
    %2016 = vmatpush.xpose.msra.mxu0 0.0
    %2017 = vmatpush.xpose.msra.mxu0 0.0
    %2018 = vmatpush.xpose.msra.mxu0 0.0
    %2019 = vmatpush.xpose.msra.mxu0 0.0
    %2020 = vmatpush.xpose.msra.mxu0 0.0
    %2021 = vmatpush.xpose.msra.mxu0 0.0
    %2022 = vmatpush.xpose.msra.mxu0 0.0
    %2023 = vmatpush.xpose.msra.mxu0 0.0
    %2024 = vmatpush.xpose.msra.mxu0 0.0
    %2025 = vmatpush.xpose.msra.mxu0 0.0
    %2026 = vmatpush.xpose.msra.mxu0 0.0
    %2027 = vmatpush.xpose.msra.mxu0 0.0
    %2028 = vmatpush.xpose.msra.mxu0 0.0
    %2029 = vmatpush.xpose.msra.mxu0 %v670
    %2030 = vmatpush.xpose.msra.mxu0 %v667
    %2031 = vmatmul.f32.gmra.mxu0 %v2007
    %v2032 = vpop.f32.mrf.mxu0
    %v2033 = vadd.f32 0.0, %v2032
    %2034 = vmatmul.f32.gmra.mxu0 %v2010
    %v2035 = vpop.f32.mrf.mxu0
    %v2036 = vadd.f32 0.0, %v2035
    %2037 = vmatmul.f32.gmra.mxu0 %v2013
    %v2038 = vpop.f32.mrf.mxu0
    %v2039 = vadd.f32 0.0, %v2038
    %2040 = vdwg.mxu0
    %v2041 = vsel %vm113, %v2033, -inf
    %v2042 = vsel %vm113, %v2036, -inf
    %v2043 = vsel %vm700, %v2039, -inf
    %v2044 = vmax.f32 %v2041, %v2042
    %v2045 = vmax.f32 %v2044, %v2043
    %v2046 = vrot.slane %v2045, 4
    %v2047 = vmax.f32 %v2045, %v2046
    %v2048 = vrot.slane %v2047, 2
    %v2049 = vmax.f32 %v2047, %v2048
    %v2050 = vrot.slane %v2049, 1
    %v2051 = vmax.f32 %v2049, %v2050
    %v2052 = vsub.f32 %v2033, %v2051
    %v2053 = vsub.f32 %v2036, %v2051
    %v2054 = vsub.f32 %v2039, %v2051
    %v2055 = vmul.f32 %v2052, 1.442695
    %v2056 = vpow.pop %v2055
    %v2057 = vmul.f32 %v2053, 1.442695
    %v2058 = vpow.pop %v2057
    %v2059 = vmul.f32 %v2054, 1.442695
    %v2060 = vpow.pop %v2059
    %v2061 = vsel %vm113, %v2056, 0.0
    %v2062 = vsel %vm113, %v2058, 0.0
    %v2063 = vadd.f32 %v2061, %v2062
    %v2064 = vsel %vm700, %v2060, 0.0
    %v2065 = vadd.f32 %v2063, %v2064
    %v2066 = vrot.slane %v2065, 4
    %v2067 = vadd.f32 %v2065, %v2066
    %v2068 = vrot.slane %v2067, 2
    %v2069 = vadd.f32 %v2067, %v2068
    %v2070 = vrot.slane %v2069, 1
    %v2071 = vadd.f32 %v2069, %v2070
    %v2072 = vmul.f32 %v2056, %v2033
    %v2073 = vmul.f32 %v2058, %v2036
    %v2074 = vmul.f32 %v2060, %v2039
    %v2075 = vsel %vm113, %v2072, 0.0
    %v2076 = vsel %vm113, %v2073, 0.0
    %v2077 = vadd.f32 %v2075, %v2076
    %v2078 = vsel %vm700, %v2074, 0.0
    %v2079 = vadd.f32 %v2077, %v2078
    %v2080 = vrot.slane %v2079, 4
    %v2081 = vadd.f32 %v2079, %v2080
    %v2082 = vrot.slane %v2081, 2
    %v2083 = vadd.f32 %v2081, %v2082
    %v2084 = vrot.slane %v2083, 1
    %v2085 = vadd.f32 %v2083, %v2084
    %v2086 = vrcp.pop %v2071
    %v2087 = vmul.f32 %v2071, %v2086
    %v2088 = vsub.f32 1.0, %v2087
    %v2089 = vmul.f32 %v2086, %v2088
    %v2090 = vadd.f32 %v2086, %v2089
    %vm2091 = vweird.f32 %v2071
    %vm2092 = vweird.f32 %v2086
    %vm2093 = vmor %vm2091, %vm2092
    %v2094 = vsel %vm2093, %v2086, %v2090
    %v2095 = vand.u32 2147483647, %v2071
    %vm2096 = vcmp.eq.f32.partialorder %v2095, 8.507059e+37
    %v2097 = vand.u32 %v2071, 2147483648
    %v2098 = vor.u32 1.1754944e-38, %v2097
    %v2099 = vsel %vm2096, %v2098, %v2094
    %v2100 = vmul.f32 %v2085, %v2099
    %v2101 = vadd.f32 %v1713, %v2100
    %v2102 = vsub.f32 0.0, %v2101
    %v2103 = vmul.f32 %v2102, 1.442695
    %v2104 = vpow.pop %v2103
    %v2105 = vadd.f32 %v2104, 1.0
    %v2106 = vrcp.pop %v2105
    %v2107 = vmul.f32 %v2105, %v2106
    %v2108 = vsub.f32 1.0, %v2107
    %v2109 = vmul.f32 %v2106, %v2108
    %v2110 = vadd.f32 %v2106, %v2109
    %vm2111 = vweird.f32 %v2105
    %vm2112 = vweird.f32 %v2106
    %vm2113 = vmor %vm2111, %vm2112
    %v2114 = vsel %vm2113, %v2106, %v2110
    %v2115 = vand.u32 2147483647, %v2105
    %vm2116 = vcmp.eq.f32.partialorder %v2115, 8.507059e+37
    %v2117 = vand.u32 %v2105, 2147483648
    %v2118 = vor.u32 1.1754944e-38, %v2117
    %v2119 = vsel %vm2116, %v2118, %v2114
    %v2120 = vmul.f32 1.0, %v2119
    %v2122 = vsel %vm113, %v2120, 0
    %2124 = vmatpush.xpose.msra.mxu0 0.0
    %2125 = vmatpush.xpose.msra.mxu0 0.0
    %2126 = vmatpush.xpose.msra.mxu0 0.0
    %2127 = vmatpush.xpose.msra.mxu0 0.0
    %2128 = vmatpush.xpose.msra.mxu0 0.0
    %2129 = vmatpush.xpose.msra.mxu0 0.0
    %2130 = vmatpush.xpose.msra.mxu0 0.0
    %2131 = vmatpush.xpose.msra.mxu0 0.0
    %2132 = vmatpush.xpose.msra.mxu0 0.0
    %2133 = vmatpush.xpose.msra.mxu0 0.0
    %2134 = vmatpush.xpose.msra.mxu0 0.0
    %2135 = vmatpush.xpose.msra.mxu0 0.0
    %2136 = vmatpush.xpose.msra.mxu0 %v1179
    %2137 = vmatpush.xpose.msra.mxu0 %v1176
    %2138 = vmatpush.xpose.msra.mxu0 %v1173
    %2139 = vmatpush.xpose.msra.mxu0 %v1170
    %2140 = vmatmul.f32.gmra.mxu0 %v2122
    %v2141 = vpop.f32.mrf.mxu0
    %v2142 = vadd.f32 %v97, %v2141
    %2143 = vdwg.mxu0
    %vm2144 = vcmp.gt.f32.partialorder %v2142, 0.0
    %v2145 = vmul.f32 %v2142, 1.442695
    %v2146 = vpow.pop %v2145
    %v2147 = vsub.f32 %v2146, 1.0
    %v2148 = vsel %vm2144, %v2142, %v2147
    %v2150 = vsel %vm151, %v2148, 0
    %2152 = vmatpush.xpose.msra.mxu0 0.0
    %2153 = vmatpush.xpose.msra.mxu0 0.0
    %2154 = vmatpush.xpose.msra.mxu0 0.0
    %2155 = vmatpush.xpose.msra.mxu0 0.0
    %2156 = vmatpush.xpose.msra.mxu0 0.0
    %2157 = vmatpush.xpose.msra.mxu0 0.0
    %2158 = vmatpush.xpose.msra.mxu0 0.0
    %2159 = vmatpush.xpose.msra.mxu0 0.0
    %2160 = vmatpush.xpose.msra.mxu0 0.0
    %2161 = vmatpush.xpose.msra.mxu0 0.0
    %2162 = vmatpush.xpose.msra.mxu0 0.0
    %2163 = vmatpush.xpose.msra.mxu0 0.0
    %2164 = vmatpush.xpose.msra.mxu0 0.0
    %2165 = vmatpush.xpose.msra.mxu0 0.0
    %2166 = vmatpush.xpose.msra.mxu0 %v1213
    %2167 = vmatpush.xpose.msra.mxu0 %v1210
    %2168 = vmatmul.f32.gmra.mxu0 %v2150
    %v2169 = vpop.f32.mrf.mxu0
    %v2170 = vadd.f32 %v100, %v2169
    %2171 = vdwg.mxu0
    %v2172 = vadd.f32 %v2170, %v2101
    %v2173 = vsub.f32 0.0, %v2172
    %v2174 = vmul.f32 %v2173, 1.442695
    %v2175 = vpow.pop %v2174
    %v2176 = vadd.f32 %v2175, 1.0
    %v2177 = vrcp.pop %v2176
    %v2178 = vmul.f32 %v2176, %v2177
    %v2179 = vsub.f32 1.0, %v2178
    %v2180 = vmul.f32 %v2177, %v2179
    %v2181 = vadd.f32 %v2177, %v2180
    %vm2182 = vweird.f32 %v2176
    %vm2183 = vweird.f32 %v2177
    %vm2184 = vmor %vm2182, %vm2183
    %v2185 = vsel %vm2184, %v2177, %v2181
    %v2186 = vand.u32 2147483647, %v2176
    %vm2187 = vcmp.eq.f32.partialorder %v2186, 8.507059e+37
    %v2188 = vand.u32 %v2176, 2147483648
    %v2189 = vor.u32 1.1754944e-38, %v2188
    %v2190 = vsel %vm2187, %v2189, %v2185
    %v2191 = vmul.f32 1.0, %v2190
    %v2193 = vsel %vm113, %v2191, 0
    %2195 = vmatpush.xpose.msra.mxu0 0.0
    %2196 = vmatpush.xpose.msra.mxu0 0.0
    %2197 = vmatpush.xpose.msra.mxu0 0.0
    %2198 = vmatpush.xpose.msra.mxu0 0.0
    %2199 = vmatpush.xpose.msra.mxu0 0.0
    %2200 = vmatpush.xpose.msra.mxu0 0.0
    %2201 = vmatpush.xpose.msra.mxu0 0.0
    %2202 = vmatpush.xpose.msra.mxu0 0.0
    %2203 = vmatpush.xpose.msra.mxu0 0.0
    %2204 = vmatpush.xpose.msra.mxu0 0.0
    %2205 = vmatpush.xpose.msra.mxu0 0.0
    %2206 = vmatpush.xpose.msra.mxu0 0.0
    %2207 = vmatpush.xpose.msra.mxu0 %v1268
    %2208 = vmatpush.xpose.msra.mxu0 %v1265
    %2209 = vmatpush.xpose.msra.mxu0 %v1262
    %2210 = vmatpush.xpose.msra.mxu0 %v1259
    %2211 = vmatmul.f32.gmra.mxu0 %v2193
    %v2212 = vpop.f32.mrf.mxu0
    %v2213 = vadd.f32 %v105, %v2212
    %2214 = vdwg.mxu0
    %vm2215 = vcmp.gt.f32.partialorder %v2213, 0.0
    %v2216 = vmul.f32 %v2213, 1.442695
    %v2217 = vpow.pop %v2216
    %v2218 = vsub.f32 %v2217, 1.0
    %v2219 = vsel %vm2215, %v2213, %v2218
    %v2221 = vsel %vm151, %v2219, 0
    %2223 = vmatpush.xpose.msra.mxu0 0.0
    %2224 = vmatpush.xpose.msra.mxu0 0.0
    %2225 = vmatpush.xpose.msra.mxu0 0.0
    %2226 = vmatpush.xpose.msra.mxu0 0.0
    %2227 = vmatpush.xpose.msra.mxu0 0.0
    %2228 = vmatpush.xpose.msra.mxu0 0.0
    %2229 = vmatpush.xpose.msra.mxu0 0.0
    %2230 = vmatpush.xpose.msra.mxu0 0.0
    %2231 = vmatpush.xpose.msra.mxu0 0.0
    %2232 = vmatpush.xpose.msra.mxu0 0.0
    %2233 = vmatpush.xpose.msra.mxu0 0.0
    %2234 = vmatpush.xpose.msra.mxu0 0.0
    %2235 = vmatpush.xpose.msra.mxu0 0.0
    %2236 = vmatpush.xpose.msra.mxu0 0.0
    %2237 = vmatpush.xpose.msra.mxu0 %v1302
    %2238 = vmatpush.xpose.msra.mxu0 %v1299
    %2239 = vmatmul.f32.gmra.mxu0 %v2221
    %v2240 = vpop.f32.mrf.mxu0
    %v2241 = vadd.f32 %v108, %v2240
    %2242 = vdwg.mxu0
    %v2243 = vadd.f32 %v2241, %v2172
    %2244 = vst.msk [vmem:[#allocation2 + $0x1] sm:$0x1] %vm1325, %v2243
    // Predicated region
    $region86: #{pallas_forward.1} parent=1 // pred_check
      _
    $region87: #{pallas_forward.1} parent=1 // pred_check_branch
      %2246 = sbr.rel (0) target = $region89
    $region88: #{pallas_forward.1} parent=1 // pred_region
      %2248 = vsyncadd [#allocation3], 0
      %s2250 = sshll.u32 [#allocation2], 4
      %s2251 = int_to_ptr.vmem [resolvable:$true] %s2250
      %s2252 = sshll.u32 %s21, 4
      %s2253 = int_to_ptr.hbm [resolvable:$true] %s2252
      %2255 = dma.vmem_to_hbm [thread:$0]  %s2251, 32, %s2253, [#allocation3]
    $region89: #{pallas_forward.1} parent=1 // pred_fallthru
      _
    // Predicated region
    $region90: #{pallas_forward.1} parent=1 // pred_check
      _
    $region91: #{pallas_forward.1} parent=1 // pred_check_branch
      %2257 = sbr.rel (0) target = $region93
    $region92: #{pallas_forward.1} parent=1 // pred_region
      %2259 = dma.done [#allocation3], 32
    $region93: #{pallas_forward.1} parent=1 // pred_fallthru
      _
    %2260 = vsyncpa [#allocation3], 1

</llo_original>
